<compile_context>
chip_gen: v6e
topology: v6e:2x2x1
jax: 0.10.0
libtpu: 0.0.40
codegen_flags: <defaults>
</compile_context>

<pallas_src>
import jax
import jax.numpy as jnp
from jax.experimental import pallas as pl
from jax.experimental.pallas import tpu as pltpu

LANE = 128          # TPU lane width; output channels are padded to a multiple
CIN_PAD = 8         # pad RGB input channels 3 -> 8 so first-layer K = 16*8 = 128
VMEM_LIMIT = 32 * 1024 * 1024   # explicit scoped-VMEM budget (safe on v5e/v6e/v7x)


def _round_up(n, m):
    return ((n + m - 1) // m) * m


# ----------------------------- Pallas kernels -----------------------------

def _matmul_bias_lrelu_kernel(x_ref, w_ref, b_ref, o_ref):
    # x: (TM, K) bf16, w: (K, Np) bf16, b: (1, Np) f32 -> o: (TM, Np) bf16
    acc = jnp.dot(x_ref[...], w_ref[...], preferred_element_type=jnp.float32)
    acc = acc + b_ref[...]
    o_ref[...] = jnp.where(acc > 0, acc, 0.01 * acc).astype(o_ref.dtype)


def _last_block_kernel(p_ref, w3_ref, b3_ref, w2_ref, o_ref):
    # Fused: last 4x4/s2 conv (+bias+LeakyReLU) and the bias-free classifier
    # conv, one batch element per grid step.
    #   p_ref : (1, S, K3)    bf16   im2col patches of the last conv
    #   w3_ref: (K3, N3)      bf16   flattened, lane-padded conv weight
    #   b3_ref: (1, N3)       f32
    #   w2_ref: (S, N3, Cp)   bf16   classifier weight per spatial position
    #   o_ref : (1, 1, Cp)    f32    lane-padded class logits
    p = p_ref[0]                                                   # (S, K3)
    h = jnp.dot(p, w3_ref[...], preferred_element_type=jnp.float32)
    h = h + b3_ref[...]
    h = jnp.where(h > 0, h, 0.01 * h).astype(jnp.bfloat16)          # (S, N3)
    s_total = h.shape[0]
    cp = w2_ref.shape[-1]
    acc = jnp.zeros((1, cp), jnp.float32)
    for s in range(s_total):                                        # static unroll
        acc = acc + jnp.dot(h[s:s + 1, :], w2_ref[s],
                            preferred_element_type=jnp.float32)
    o_ref[0] = acc


# ----------------------------- kernel wrappers -----------------------------

def conv_matmul_bias_lrelu(patches, w_flat, b_pad, tm=512):
    """Fused (M, K) @ (K, Np) + bias + LeakyReLU, tiled & pipelined over M."""
    M, K = patches.shape
    _, Np = w_flat.shape
    TM = M if M <= tm else tm              # TM == M (full) or a multiple of 8
    return pl.pallas_call(
        _matmul_bias_lrelu_kernel,
        out_shape=jax.ShapeDtypeStruct((M, Np), jnp.bfloat16),
        grid=(pl.cdiv(M, TM),),
        in_specs=[pl.BlockSpec((TM, K), lambda m: (m, 0)),
                  pl.BlockSpec((K, Np), lambda m: (0, 0)),
                  pl.BlockSpec((1, Np), lambda m: (0, 0))],
        out_specs=pl.BlockSpec((TM, Np), lambda m: (m, 0)),
        compiler_params=pltpu.CompilerParams(
            dimension_semantics=("parallel",),
            vmem_limit_bytes=VMEM_LIMIT),
    )(patches, w_flat, b_pad)


def last_conv_and_classify(p3, w3_flat, b3_pad, w2s):
    """Last conv layer + final bias-free classifier matmul, fused; grid over B."""
    B, S, K3 = p3.shape
    N3 = w3_flat.shape[1]
    Cp = w2s.shape[-1]
    out = pl.pallas_call(
        _last_block_kernel,
        out_shape=jax.ShapeDtypeStruct((B, 1, Cp), jnp.float32),
        grid=(B,),
        in_specs=[pl.BlockSpec((1, S, K3), lambda b: (b, 0, 0)),
                  pl.BlockSpec((K3, N3), lambda b: (0, 0)),
                  pl.BlockSpec((1, N3), lambda b: (0, 0)),
                  pl.BlockSpec((S, N3, Cp), lambda b: (0, 0, 0))],
        out_specs=pl.BlockSpec((1, 1, Cp), lambda b: (b, 0, 0)),
        compiler_params=pltpu.CompilerParams(
            dimension_semantics=("parallel",),
            vmem_limit_bytes=VMEM_LIMIT),
    )(p3, w3_flat, b3_pad, w2s)
    return out.reshape(B, Cp)


# ------------------------------ host-side glue ------------------------------

def im2col_s2(x_nhwc):
    """im2col for a 4x4 / stride-2 / pad-1 conv.  (B,H,W,C) -> (B*Ho*Wo, 16*C).

    Patch-feature ordering is (kh, kw, ci), matching the flattened weights.
    """
    B, H, W, C = x_nhwc.shape
    assert H % 2 == 0 and W % 2 == 0, "spatial dims must be even"
    Ho, Wo = H // 2, W // 2
    xp = jnp.pad(x_nhwc, ((0, 0), (1, 1), (1, 1), (0, 0)))
    cols = [xp[:, kh:kh + 2 * Ho:2, kw:kw + 2 * Wo:2, :]
            for kh in range(4) for kw in range(4)]
    return jnp.concatenate(cols, axis=-1).reshape(B * Ho * Wo, 16 * C)


# ------------------------- parameter init + prepare -------------------------

def init_params(key, image_size=16, conv_dim=8, c_dim=4, repeat_num=3):
    """Deterministic init mirroring the PyTorch module's layer shapes."""
    convs = []
    in_c, out_c = 3, conv_dim
    for _ in range(repeat_num):
        key, kw_key, kb_key = jax.random.split(key, 3)
        fan_in = in_c * 4 * 4
        bound = float(fan_in) ** -0.5
        w = jax.random.uniform(kw_key, (out_c, in_c, 4, 4), jnp.float32, -bound, bound)
        b = jax.random.uniform(kb_key, (out_c,), jnp.float32, -bound, bound)
        convs.append((w, b))
        in_c, out_c = out_c, out_c * 2

    ksize = image_size // (2 ** repeat_num)
    key, kw_key = jax.random.split(key)
    fan_in2 = in_c * ksize * ksize
    bound2 = float(fan_in2) ** -0.5
    w2 = jax.random.uniform(kw_key, (c_dim, in_c, ksize, ksize), jnp.float32,
                            -bound2, bound2)
    return convs, w2


def prepare_params(raw_convs, w2):
    """Hoist every weight reshape / zero-pad / bf16 cast out of the forward."""
    convs = []
    for li, (w, b) in enumerate(raw_convs):
        cout, cin, kh, kw = w.shape
        if li == 0 and cin < CIN_PAD:          # pad RGB channels so K = 128
            w = jnp.pad(w, ((0, 0), (0, CIN_PAD - cin), (0, 0), (0, 0)))
            cin = CIN_PAD
        k = kh * kw * cin
        n_pad = _round_up(cout, LANE)
        # (cout, cin, kh, kw) -> (kh, kw, cin, cout) -> (K, cout) -> lane-pad
        w_flat = jnp.transpose(w, (2, 3, 1, 0)).reshape(k, cout)
        w_flat = jnp.pad(w_flat, ((0, 0), (0, n_pad - cout))).astype(jnp.bfloat16)
        b_pad = jnp.pad(b, (0, n_pad - cout)).reshape(1, n_pad).astype(jnp.float32)
        convs.append((w_flat, b_pad, cout))

    c_dim, c3, ks, _ = w2.shape
    n3_pad = _round_up(c3, LANE)
    c_pad = _round_up(c_dim, LANE)
    # (c_dim, c3, ks, ks) -> (ks, ks, c3, c_dim) -> (S, c3, c_dim) -> pad to lanes
    w2s = jnp.transpose(w2, (2, 3, 1, 0)).reshape(ks * ks, c3, c_dim)
    w2s = jnp.pad(w2s, ((0, 0), (0, n3_pad - c3), (0, c_pad - c_dim)))
    w2s = w2s.astype(jnp.bfloat16)
    return convs, (w2s, c_dim)


# ----------------------------------- forward -----------------------------------

def classifier_forward(x_nchw, prep):
    """Forward pass matching Classifier.forward (input NCHW, output (B, c_dim))."""
    convs, (w2s, c_dim) = prep
    h = jnp.transpose(x_nchw, (0, 2, 3, 1)).astype(jnp.bfloat16)     # NCHW -> NHWC
    if h.shape[-1] < CIN_PAD:                                        # channel pad 3->8
        h = jnp.pad(h, ((0, 0), (0, 0), (0, 0), (0, CIN_PAD - h.shape[-1])))

    n_conv = len(convs)
    for li, (w_flat, b_pad, cout) in enumerate(convs):
        B, H, W, _ = h.shape
        Ho, Wo = H // 2, W // 2
        patches = im2col_s2(h)                       # (B*Ho*Wo, 16*C) bf16
        if li < n_conv - 1:
            out = conv_matmul_bias_lrelu(patches, w_flat, b_pad)     # (M, Np) bf16
            h = out[:, :cout].reshape(B, Ho, Wo, cout)
        else:
            # last conv + classifier fused in one Pallas call, grid over batch
            p3 = patches.reshape(B, Ho * Wo, patches.shape[-1])
            logits_pad = last_conv_and_classify(p3, w_flat, b_pad, w2s)   # (B, Cp)
            return logits_pad[:, :c_dim]


# ----------------------------------- main -----------------------------------

if __name__ == "__main__":
    # Small, shape-consistent configuration:
    #   image_size=16, conv_dim=8, c_dim=4, repeat_num=3
    #   spatial: 16 -> 8 -> 4 -> 2; final conv kernel = 16 / 2**3 = 2
    image_size, conv_dim, c_dim, repeat_num = 16, 8, 4, 3
    batch = 2

    key = jax.random.PRNGKey(0)
    key, pkey, xkey = jax.random.split(key, 3)

    raw_convs, w2 = init_params(pkey, image_size=image_size, conv_dim=conv_dim,
                                c_dim=c_dim, repeat_num=repeat_num)
    prep = prepare_params(raw_convs, w2)
    x = jax.random.normal(xkey, (batch, 3, image_size, image_size), jnp.float32)

    fwd = jax.jit(lambda xx: classifier_forward(xx, prep))
    out = jax.block_until_ready(fwd(x))

    assert out.shape == (batch, c_dim), out.shape
    assert out.dtype == jnp.float32, out.dtype
    assert bool(jnp.all(jnp.isfinite(out)))
    print("KERNEL_OK")
</pallas_src>

<mosaic_0001>
module attributes {stable_mosaic.version = 11 : i64} {
  func.func @_matmul_bias_lrelu_kernel(%arg0: i32, %arg1: memref<128x128xbf16, #tpu.memory_space<vmem>>, %arg2: memref<128x128xbf16, #tpu.memory_space<vmem>>, %arg3: memref<1x128xf32, #tpu.memory_space<vmem>>, %arg4: memref<128x128xbf16, #tpu.memory_space<vmem>>) attributes {dimension_semantics = [#tpu.dimension_semantics<parallel>], iteration_bounds = array<i64: 1>, scalar_prefetch = 0 : i64, scratch_operands = 0 : i64, tpu.core_type = #tpu.core_type<tc>, window_params = [{transform_indices = @transform_0, window_bounds = array<i64: 128, 128>}, {pipeline_mode = #tpu.pipeline_mode<synchronous>, transform_indices = @transform_1, window_bounds = array<i64: 128, 128>}, {pipeline_mode = #tpu.pipeline_mode<synchronous>, transform_indices = @transform_2, window_bounds = array<i64: 1, 128>}, {transform_indices = @transform_3, window_bounds = array<i64: 128, 128>}]} {
    %c0 = arith.constant 0 : index
    %c0_0 = arith.constant 0 : index
    %0 = vector.load %arg1[%c0, %c0_0] : memref<128x128xbf16, #tpu.memory_space<vmem>>, vector<128x128xbf16>
    %c0_1 = arith.constant 0 : index
    %c0_2 = arith.constant 0 : index
    %1 = vector.load %arg2[%c0_1, %c0_2] : memref<128x128xbf16, #tpu.memory_space<vmem>>, vector<128x128xbf16>
    %cst = arith.constant dense<0.000000e+00> : vector<128x128xf32>
    %2 = tpu.matmul %0, %1, %cst {dimension_numbers = #tpu.dot_dimension_numbers<[1], [0], [0], [1], [0, 0, 1, 1], [], []>} : vector<128x128xbf16>, vector<128x128xbf16>, vector<128x128xf32> -> vector<128x128xf32>
    %c0_3 = arith.constant 0 : index
    %c0_4 = arith.constant 0 : index
    %3 = vector.load %arg3[%c0_3, %c0_4] : memref<1x128xf32, #tpu.memory_space<vmem>>, vector<1x128xf32>
    %4 = vector.broadcast %3 : vector<1x128xf32> to vector<128x128xf32>
    %5 = arith.addf %2, %4 : vector<128x128xf32>
    %cst_5 = arith.constant 0.000000e+00 : f32
    %6 = vector.broadcast %cst_5 : f32 to vector<128x128xf32>
    %7 = arith.cmpf ogt, %5, %6 : vector<128x128xf32>
    %cst_6 = arith.constant 0.00999999977 : f32
    %8 = vector.broadcast %cst_6 : f32 to vector<128x128xf32>
    %9 = arith.mulf %8, %5 : vector<128x128xf32>
    %10 = arith.select %7, %5, %9 : vector<128x128xi1>, vector<128x128xf32>
    %11 = arith.truncf %10 : vector<128x128xf32> to vector<128x128xbf16>
    %c0_7 = arith.constant 0 : index
    %c0_8 = arith.constant 0 : index
    %12 = vector.load %arg4[%c0_7, %c0_8] : memref<128x128xbf16, #tpu.memory_space<vmem>>, vector<128x128xbf16>
    tpu.vector_store %arg4[%c0_7, %c0_8], %11 {strides = array<i32>} : memref<128x128xbf16, #tpu.memory_space<vmem>>, vector<128x128xbf16>,
    return
  }
  func.func @transform_0(%arg0: i32) -> (i32, i32) {
    %c0_i32 = arith.constant 0 : i32
    %c0_i32_0 = arith.constant 0 : i32
    return %arg0, %c0_i32 : i32, i32
  }
  func.func @transform_1(%arg0: i32) -> (i32, i32) {
    %c0_i32 = arith.constant 0 : i32
    %c0_i32_0 = arith.constant 0 : i32
    %c0_i32_1 = arith.constant 0 : i32
    return %c0_i32, %c0_i32_0 : i32, i32
  }
  func.func @transform_2(%arg0: i32) -> (i32, i32) {
    %c0_i32 = arith.constant 0 : i32
    %c0_i32_0 = arith.constant 0 : i32
    %c0_i32_1 = arith.constant 0 : i32
    return %c0_i32, %c0_i32_0 : i32, i32
  }
  func.func @transform_3(%arg0: i32) -> (i32, i32) {
    %c0_i32 = arith.constant 0 : i32
    %c0_i32_0 = arith.constant 0 : i32
    return %arg0, %c0_i32 : i32, i32
  }
}

module attributes {stable_mosaic.version = 11 : i64} {
  func.func @_matmul_bias_lrelu_kernel(%arg0: i32, %arg1: memref<32x128xbf16, #tpu.memory_space<vmem>>, %arg2: memref<128x128xbf16, #tpu.memory_space<vmem>>, %arg3: memref<1x128xf32, #tpu.memory_space<vmem>>, %arg4: memref<32x128xbf16, #tpu.memory_space<vmem>>) attributes {dimension_semantics = [#tpu.dimension_semantics<parallel>], iteration_bounds = array<i64: 1>, scalar_prefetch = 0 : i64, scratch_operands = 0 : i64, tpu.core_type = #tpu.core_type<tc>, window_params = [{transform_indices = @transform_0, window_bounds = array<i64: 32, 128>}, {pipeline_mode = #tpu.pipeline_mode<synchronous>, transform_indices = @transform_1, window_bounds = array<i64: 128, 128>}, {pipeline_mode = #tpu.pipeline_mode<synchronous>, transform_indices = @transform_2, window_bounds = array<i64: 1, 128>}, {transform_indices = @transform_3, window_bounds = array<i64: 32, 128>}]} {
    %c0 = arith.constant 0 : index
    %c0_0 = arith.constant 0 : index
    %0 = vector.load %arg1[%c0, %c0_0] : memref<32x128xbf16, #tpu.memory_space<vmem>>, vector<32x128xbf16>
    %c0_1 = arith.constant 0 : index
    %c0_2 = arith.constant 0 : index
    %1 = vector.load %arg2[%c0_1, %c0_2] : memref<128x128xbf16, #tpu.memory_space<vmem>>, vector<128x128xbf16>
    %cst = arith.constant dense<0.000000e+00> : vector<32x128xf32>
    %2 = tpu.matmul %0, %1, %cst {dimension_numbers = #tpu.dot_dimension_numbers<[1], [0], [0], [1], [0, 0, 1, 1], [], []>} : vector<32x128xbf16>, vector<128x128xbf16>, vector<32x128xf32> -> vector<32x128xf32>
    %c0_3 = arith.constant 0 : index
    %c0_4 = arith.constant 0 : index
    %3 = vector.load %arg3[%c0_3, %c0_4] : memref<1x128xf32, #tpu.memory_space<vmem>>, vector<1x128xf32>
    %4 = vector.broadcast %3 : vector<1x128xf32> to vector<32x128xf32>
    %5 = arith.addf %2, %4 : vector<32x128xf32>
    %cst_5 = arith.constant 0.000000e+00 : f32
    %6 = vector.broadcast %cst_5 : f32 to vector<32x128xf32>
    %7 = arith.cmpf ogt, %5, %6 : vector<32x128xf32>
    %cst_6 = arith.constant 0.00999999977 : f32
    %8 = vector.broadcast %cst_6 : f32 to vector<32x128xf32>
    %9 = arith.mulf %8, %5 : vector<32x128xf32>
    %10 = arith.select %7, %5, %9 : vector<32x128xi1>, vector<32x128xf32>
    %11 = arith.truncf %10 : vector<32x128xf32> to vector<32x128xbf16>
    %c0_7 = arith.constant 0 : index
    %c0_8 = arith.constant 0 : index
    %12 = vector.load %arg4[%c0_7, %c0_8] : memref<32x128xbf16, #tpu.memory_space<vmem>>, vector<32x128xbf16>
    tpu.vector_store %arg4[%c0_7, %c0_8], %11 {strides = array<i32>} : memref<32x128xbf16, #tpu.memory_space<vmem>>, vector<32x128xbf16>,
    return
  }
  func.func @transform_0(%arg0: i32) -> (i32, i32) {
    %c0_i32 = arith.constant 0 : i32
    %c0_i32_0 = arith.constant 0 : i32
    return %arg0, %c0_i32 : i32, i32
  }
  func.func @transform_1(%arg0: i32) -> (i32, i32) {
    %c0_i32 = arith.constant 0 : i32
    %c0_i32_0 = arith.constant 0 : i32
    %c0_i32_1 = arith.constant 0 : i32
    return %c0_i32, %c0_i32_0 : i32, i32
  }
  func.func @transform_2(%arg0: i32) -> (i32, i32) {
    %c0_i32 = arith.constant 0 : i32
    %c0_i32_0 = arith.constant 0 : i32
    %c0_i32_1 = arith.constant 0 : i32
    return %c0_i32, %c0_i32_0 : i32, i32
  }
  func.func @transform_3(%arg0: i32) -> (i32, i32) {
    %c0_i32 = arith.constant 0 : i32
    %c0_i32_0 = arith.constant 0 : i32
    return %arg0, %c0_i32 : i32, i32
  }
}

module attributes {stable_mosaic.version = 11 : i64} {
  func.func @_last_block_kernel(%arg0: i32, %arg1: memref<1x4x256xbf16, #tpu.memory_space<vmem>>, %arg2: memref<256x128xbf16, #tpu.memory_space<vmem>>, %arg3: memref<1x128xf32, #tpu.memory_space<vmem>>, %arg4: memref<4x128x128xbf16, #tpu.memory_space<vmem>>, %arg5: memref<1x1x128xf32, #tpu.memory_space<vmem>>) attributes {dimension_semantics = [#tpu.dimension_semantics<parallel>], iteration_bounds = array<i64: 2>, scalar_prefetch = 0 : i64, scratch_operands = 0 : i64, tpu.core_type = #tpu.core_type<tc>, window_params = [{transform_indices = @transform_0, window_bounds = array<i64: 1, 4, 256>}, {pipeline_mode = #tpu.pipeline_mode<synchronous>, transform_indices = @transform_1, window_bounds = array<i64: 256, 128>}, {pipeline_mode = #tpu.pipeline_mode<synchronous>, transform_indices = @transform_2, window_bounds = array<i64: 1, 128>}, {pipeline_mode = #tpu.pipeline_mode<synchronous>, transform_indices = @transform_3, window_bounds = array<i64: 4, 128, 128>}, {transform_indices = @transform_4, window_bounds = array<i64: 1, 1, 128>}]} {
    %c0 = arith.constant 0 : index
    %c0_0 = arith.constant 0 : index
    %c0_1 = arith.constant 0 : index
    %0 = vector.load %arg1[%c0, %c0_0, %c0_1] : memref<1x4x256xbf16, #tpu.memory_space<vmem>>, vector<1x4x256xbf16>
    %1 = vector.shape_cast %0 : vector<1x4x256xbf16> to vector<4x256xbf16>
    %c0_2 = arith.constant 0 : index
    %c0_3 = arith.constant 0 : index
    %2 = vector.load %arg2[%c0_2, %c0_3] : memref<256x128xbf16, #tpu.memory_space<vmem>>, vector<256x128xbf16>
    %cst = arith.constant dense<0.000000e+00> : vector<4x128xf32>
    %3 = tpu.matmul %1, %2, %cst {dimension_numbers = #tpu.dot_dimension_numbers<[1], [0], [0], [1], [0, 0, 1, 1], [], []>} : vector<4x256xbf16>, vector<256x128xbf16>, vector<4x128xf32> -> vector<4x128xf32>
    %c0_4 = arith.constant 0 : index
    %c0_5 = arith.constant 0 : index
    %4 = vector.load %arg3[%c0_4, %c0_5] : memref<1x128xf32, #tpu.memory_space<vmem>>, vector<1x128xf32>
    %5 = vector.broadcast %4 : vector<1x128xf32> to vector<4x128xf32>
    %6 = arith.addf %3, %5 : vector<4x128xf32>
    %cst_6 = arith.constant 0.000000e+00 : f32
    %7 = vector.broadcast %cst_6 : f32 to vector<4x128xf32>
    %8 = arith.cmpf ogt, %6, %7 : vector<4x128xf32>
    %cst_7 = arith.constant 0.00999999977 : f32
    %9 = vector.broadcast %cst_7 : f32 to vector<4x128xf32>
    %10 = arith.mulf %9, %6 : vector<4x128xf32>
    %11 = arith.select %8, %6, %10 : vector<4x128xi1>, vector<4x128xf32>
    %12 = arith.truncf %11 : vector<4x128xf32> to vector<4x128xbf16>
    %cst_8 = arith.constant 0.000000e+00 : f32
    %13 = vector.broadcast %cst_8 : f32 to vector<1x128xf32>
    %14 = vector.extract_strided_slice %12 {offsets = [0, 0], sizes = [1, 128], strides = [1, 1]} : vector<4x128xbf16> to vector<1x128xbf16>
    %c0_9 = arith.constant 0 : index
    %c0_10 = arith.constant 0 : index
    %c0_11 = arith.constant 0 : index
    %15 = vector.load %arg4[%c0_9, %c0_10, %c0_11] : memref<4x128x128xbf16, #tpu.memory_space<vmem>>, vector<1x128x128xbf16>
    %16 = vector.shape_cast %15 : vector<1x128x128xbf16> to vector<128x128xbf16>
    %cst_12 = arith.constant dense<0.000000e+00> : vector<1x128xf32>
    %17 = tpu.matmul %14, %16, %cst_12 {dimension_numbers = #tpu.dot_dimension_numbers<[1], [0], [0], [1], [0, 0, 1, 1], [], []>} : vector<1x128xbf16>, vector<128x128xbf16>, vector<1x128xf32> -> vector<1x128xf32>
    %18 = arith.addf %13, %17 : vector<1x128xf32>
    %19 = vector.extract_strided_slice %12 {offsets = [1, 0], sizes = [1, 128], strides = [1, 1]} : vector<4x128xbf16> to vector<1x128xbf16>
    %c1 = arith.constant 1 : index
    %c0_13 = arith.constant 0 : index
    %c0_14 = arith.constant 0 : index
    %20 = vector.load %arg4[%c1, %c0_13, %c0_14] : memref<4x128x128xbf16, #tpu.memory_space<vmem>>, vector<1x128x128xbf16>
    %21 = vector.shape_cast %20 : vector<1x128x128xbf16> to vector<128x128xbf16>
    %cst_15 = arith.constant dense<0.000000e+00> : vector<1x128xf32>
    %22 = tpu.matmul %19, %21, %cst_15 {dimension_numbers = #tpu.dot_dimension_numbers<[1], [0], [0], [1], [0, 0, 1, 1], [], []>} : vector<1x128xbf16>, vector<128x128xbf16>, vector<1x128xf32> -> vector<1x128xf32>
    %23 = arith.addf %18, %22 : vector<1x128xf32>
    %24 = vector.extract_strided_slice %12 {offsets = [2, 0], sizes = [1, 128], strides = [1, 1]} : vector<4x128xbf16> to vector<1x128xbf16>
    %c2 = arith.constant 2 : index
    %c0_16 = arith.constant 0 : index
    %c0_17 = arith.constant 0 : index
    %25 = vector.load %arg4[%c2, %c0_16, %c0_17] : memref<4x128x128xbf16, #tpu.memory_space<vmem>>, vector<1x128x128xbf16>
    %26 = vector.shape_cast %25 : vector<1x128x128xbf16> to vector<128x128xbf16>
    %cst_18 = arith.constant dense<0.000000e+00> : vector<1x128xf32>
    %27 = tpu.matmul %24, %26, %cst_18 {dimension_numbers = #tpu.dot_dimension_numbers<[1], [0], [0], [1], [0, 0, 1, 1], [], []>} : vector<1x128xbf16>, vector<128x128xbf16>, vector<1x128xf32> -> vector<1x128xf32>
    %28 = arith.addf %23, %27 : vector<1x128xf32>
    %29 = vector.extract_strided_slice %12 {offsets = [3, 0], sizes = [1, 128], strides = [1, 1]} : vector<4x128xbf16> to vector<1x128xbf16>
    %c3 = arith.constant 3 : index
    %c0_19 = arith.constant 0 : index
    %c0_20 = arith.constant 0 : index
    %30 = vector.load %arg4[%c3, %c0_19, %c0_20] : memref<4x128x128xbf16, #tpu.memory_space<vmem>>, vector<1x128x128xbf16>
    %31 = vector.shape_cast %30 : vector<1x128x128xbf16> to vector<128x128xbf16>
    %cst_21 = arith.constant dense<0.000000e+00> : vector<1x128xf32>
    %32 = tpu.matmul %29, %31, %cst_21 {dimension_numbers = #tpu.dot_dimension_numbers<[1], [0], [0], [1], [0, 0, 1, 1], [], []>} : vector<1x128xbf16>, vector<128x128xbf16>, vector<1x128xf32> -> vector<1x128xf32>
    %33 = arith.addf %28, %32 : vector<1x128xf32>
    %c0_22 = arith.constant 0 : index
    %c0_23 = arith.constant 0 : index
    %c0_24 = arith.constant 0 : index
    %34 = vector.load %arg5[%c0_22, %c0_23, %c0_24] : memref<1x1x128xf32, #tpu.memory_space<vmem>>, vector<1x1x128xf32>
    %35 = vector.shape_cast %34 : vector<1x1x128xf32> to vector<1x128xf32>
    %36 = vector.shape_cast %33 : vector<1x128xf32> to vector<1x1x128xf32>
    tpu.vector_store %arg5[%c0_22, %c0_23, %c0_24], %36 {strides = array<i32>} : memref<1x1x128xf32, #tpu.memory_space<vmem>>, vector<1x1x128xf32>,
    return
  }
  func.func @transform_0(%arg0: i32) -> (i32, i32, i32) {
    %c0_i32 = arith.constant 0 : i32
    %c0_i32_0 = arith.constant 0 : i32
    %c0_i32_1 = arith.constant 0 : i32
    return %arg0, %c0_i32, %c0_i32_0 : i32, i32, i32
  }
  func.func @transform_1(%arg0: i32) -> (i32, i32) {
    %c0_i32 = arith.constant 0 : i32
    %c0_i32_0 = arith.constant 0 : i32
    %c0_i32_1 = arith.constant 0 : i32
    return %c0_i32, %c0_i32_0 : i32, i32
  }
  func.func @transform_2(%arg0: i32) -> (i32, i32) {
    %c0_i32 = arith.constant 0 : i32
    %c0_i32_0 = arith.constant 0 : i32
    %c0_i32_1 = arith.constant 0 : i32
    return %c0_i32, %c0_i32_0 : i32, i32
  }
  func.func @transform_3(%arg0: i32) -> (i32, i32, i32) {
    %c0_i32 = arith.constant 0 : i32
    %c0_i32_0 = arith.constant 0 : i32
    %c0_i32_1 = arith.constant 0 : i32
    %c0_i32_2 = arith.constant 0 : i32
    return %c0_i32, %c0_i32_0, %c0_i32_1 : i32, i32, i32
  }
  func.func @transform_4(%arg0: i32) -> (i32, i32, i32) {
    %c0_i32 = arith.constant 0 : i32
    %c0_i32_0 = arith.constant 0 : i32
    %c0_i32_1 = arith.constant 0 : i32
    return %arg0, %c0_i32, %c0_i32_0 : i32, i32, i32
  }
}

</mosaic_0001>

<llo_original>
// kernel: _lambda_.3
$region0: #{_lambda_.3}
  #allocation0 [shape = 'u32[]', space=smem, size = 0x4, offset = 0x4, fixed_abs, tag = 'smem constant byte address 0x4 - core index']
  #allocation1 [shape = 'u32[144,128]{1,0:T(1,128)}', space=vmem, size = 0x12000, scoped, tag = 'internal scratch']
  %s0 = inlined_call_operand.vmem [shape: bf16[128,128], index: 0, kind: input, shape index: {}]
  %s1 = inlined_call_operand.vmem [shape: bf16[128,128], index: 1, kind: input, shape index: {}]
  %s2 = inlined_call_operand.vmem [shape: f32[1,128], index: 2, kind: input, shape index: {}]
  %s3 = inlined_call_operand.vmem [shape: bf16[128,128], index: 3, kind: output, shape index: {}]
  %s4 = sld [smem:[#allocation0]]
  $region22: #{_lambda_.3} parent=0
    _
  %s6 = ssub.s32 1, %s4
  %s7 = scalar_select 0, %s6, %s4
  // Predicated region
  $region2: #{_lambda_.3} parent=0 // pred_check
    _
  $region3: #{_lambda_.3} parent=0 // pred_check_branch
    %9 = sbr.rel (0) target = $region5
  $region4: #{_lambda_.3} parent=0 // pred_region
    _
  $region5: #{_lambda_.3} parent=0 // pred_fallthru
    _
  // Predicated region
  $region6: #{_lambda_.3} parent=0 // pred_check
    _
  $region7: #{_lambda_.3} parent=0 // pred_check_branch
    %11 = sbr.rel (0) target = $region9
  $region8: #{_lambda_.3} parent=0 // pred_region
    _
  $region9: #{_lambda_.3} parent=0 // pred_fallthru
    _
  // Predicated region
  $region10: #{_lambda_.3} parent=0 // pred_check
    _
  $region11: #{_lambda_.3} parent=0 // pred_check_branch
    %13 = sbr.rel (0) target = $region13
  $region12: #{_lambda_.3} parent=0 // pred_region
    _
  $region13: #{_lambda_.3} parent=0 // pred_fallthru
    _
  %v15 = vld [vmem:[%s0] sm:$0xf]
  %v16 = vld [vmem:[%s0 + $0x4] sm:$0xf]
  %v17 = vld [vmem:[%s0 + $0x8] sm:$0xf]
  %v18 = vld [vmem:[%s0 + $0xc] sm:$0xf]
  %v19 = vld [vmem:[%s0 + $0x10] sm:$0xf]
  %v20 = vld [vmem:[%s0 + $0x14] sm:$0xf]
  %v21 = vld [vmem:[%s0 + $0x18] sm:$0xf]
  %v22 = vld [vmem:[%s0 + $0x1c] sm:$0xf]
  %v23 = vld [vmem:[%s0 + $0x20] sm:$0xf]
  %v24 = vld [vmem:[%s0 + $0x24] sm:$0xf]
  %v25 = vld [vmem:[%s0 + $0x28] sm:$0xf]
  %v26 = vld [vmem:[%s0 + $0x2c] sm:$0xf]
  %v27 = vld [vmem:[%s0 + $0x30] sm:$0xf]
  %v28 = vld [vmem:[%s0 + $0x34] sm:$0xf]
  %v29 = vld [vmem:[%s0 + $0x38] sm:$0xf]
  %v30 = vld [vmem:[%s0 + $0x3c] sm:$0xf]
  %v31 = vld [vmem:[%s1] sm:$0xf]
  %v32 = vld [vmem:[%s1 + $0x4] sm:$0xf]
  %v33 = vld [vmem:[%s1 + $0x8] sm:$0xf]
  %v34 = vld [vmem:[%s1 + $0xc] sm:$0xf]
  %v35 = vld [vmem:[%s1 + $0x10] sm:$0xf]
  %v36 = vld [vmem:[%s1 + $0x14] sm:$0xf]
  %v37 = vld [vmem:[%s1 + $0x18] sm:$0xf]
  %v38 = vld [vmem:[%s1 + $0x1c] sm:$0xf]
  %v39 = vld [vmem:[%s1 + $0x20] sm:$0xf]
  %v40 = vld [vmem:[%s1 + $0x24] sm:$0xf]
  %v41 = vld [vmem:[%s1 + $0x28] sm:$0xf]
  %v42 = vld [vmem:[%s1 + $0x2c] sm:$0xf]
  %v43 = vld [vmem:[%s1 + $0x30] sm:$0xf]
  %v44 = vld [vmem:[%s1 + $0x34] sm:$0xf]
  %v45 = vld [vmem:[%s1 + $0x38] sm:$0xf]
  %v46 = vld [vmem:[%s1 + $0x3c] sm:$0xf]
  %v47 = vld [vmem:[%s2] sm:$0x1]
  %v49 = vlaneseq
  %v50 = vshrl.u32 %v49, 7
  %v51 = vsub.s32 0, %v50
  %v52 = vrot.slane %v47, %v51
  %v70 = vunpack.c.l.b16 %v15
  %v71 = vunpack.c.l.b16 %v16
  %v72 = vunpack.c.l.b16 %v17
  %v73 = vunpack.c.l.b16 %v18
  %v74 = vunpack.c.l.b16 %v19
  %v75 = vunpack.c.l.b16 %v20
  %v76 = vunpack.c.l.b16 %v21
  %v77 = vunpack.c.l.b16 %v22
  %v78 = vunpack.c.l.b16 %v23
  %v79 = vunpack.c.l.b16 %v24
  %v80 = vunpack.c.l.b16 %v25
  %v81 = vunpack.c.l.b16 %v26
  %v82 = vunpack.c.l.b16 %v27
  %v83 = vunpack.c.l.b16 %v28
  %v84 = vunpack.c.l.b16 %v29
  %v85 = vunpack.c.l.b16 %v30
  %v86 = vpack.c.b16 %v71, %v70
  %v87 = vpack.c.b16 %v73, %v72
  %v88 = vpack.c.b16 %v75, %v74
  %v89 = vpack.c.b16 %v77, %v76
  %v90 = vpack.c.b16 %v79, %v78
  %v91 = vpack.c.b16 %v81, %v80
  %v92 = vpack.c.b16 %v83, %v82
  %v93 = vpack.c.b16 %v85, %v84
  %v118 = vunpack.c.l.b16 %v31
  %v119 = vunpack.c.l.b16 %v32
  %v120 = vunpack.c.l.b16 %v33
  %v121 = vunpack.c.l.b16 %v34
  %v122 = vunpack.c.l.b16 %v35
  %v123 = vunpack.c.l.b16 %v36
  %v124 = vunpack.c.l.b16 %v37
  %v125 = vunpack.c.l.b16 %v38
  %v126 = vunpack.c.l.b16 %v39
  %v127 = vunpack.c.l.b16 %v40
  %v128 = vunpack.c.l.b16 %v41
  %v129 = vunpack.c.l.b16 %v42
  %v130 = vunpack.c.l.b16 %v43
  %v131 = vunpack.c.l.b16 %v44
  %v132 = vunpack.c.l.b16 %v45
  %v133 = vunpack.c.l.b16 %v46
  %v134 = vpack.c.b16 %v119, %v118
  %v135 = vpack.c.b16 %v121, %v120
  %v136 = vpack.c.b16 %v123, %v122
  %v137 = vpack.c.b16 %v125, %v124
  %v138 = vpack.c.b16 %v127, %v126
  %v139 = vpack.c.b16 %v129, %v128
  %v140 = vpack.c.b16 %v131, %v130
  %v141 = vpack.c.b16 %v133, %v132
  %150 = vmatprep.subr.bf16.mxu0 0
  %151 = vmatpush1.bf16.msra.mxu0 %v141
  %152 = vmatprep.subr.bf16.mxu0 0
  %153 = vmatpush1.bf16.msra.mxu0 %v140
  %154 = vmatprep.subr.bf16.mxu0 0
  %155 = vmatpush1.bf16.msra.mxu0 %v139
  %156 = vmatprep.subr.bf16.mxu0 0
  %157 = vmatpush1.bf16.msra.mxu0 %v138
  %158 = vmatprep.subr.bf16.mxu0 0
  %159 = vmatpush1.bf16.msra.mxu0 %v137
  %160 = vmatprep.subr.bf16.mxu0 0
  %161 = vmatpush1.bf16.msra.mxu0 %v136
  %162 = vmatprep.subr.bf16.mxu0 0
  %163 = vmatpush1.bf16.msra.mxu0 %v135
  %164 = vmatprep.subr.bf16.mxu0 0
  %165 = vmatpush1.bf16.msra.mxu0 %v134
  %166 = vmatprep.subr.bf16.mxu0 0
  %167 = vmatpush2.bf16.msra.mxu0 0
  %168 = vmatprep.subr.bf16.mxu0 0
  %169 = vmatpush2.bf16.msra.mxu0 0
  %170 = vmatprep.subr.bf16.mxu0 0
  %171 = vmatpush2.bf16.msra.mxu0 0
  %172 = vmatprep.subr.bf16.mxu0 0
  %173 = vmatpush2.bf16.msra.mxu0 0
  %174 = vmatprep.subr.bf16.mxu0 0
  %175 = vmatpush2.bf16.msra.mxu0 0
  %176 = vmatprep.subr.bf16.mxu0 0
  %177 = vmatpush2.bf16.msra.mxu0 0
  %178 = vmatprep.subr.bf16.mxu0 0
  %179 = vmatpush2.bf16.msra.mxu0 0
  %180 = vmatprep.subr.bf16.mxu0 0
  %181 = vmatpush2.bf16.msra.mxu0 0
  %182 = vmatprep.mubr.bf16.mxu0 0
  %183 = vmatmul.mubr.bf16.gmra.mxu0 %v86
  %v184 = vpop.f32.mrf.mxu0
  %v185 = vadd.f32 %v52, %v184
  %v186 = vpop.f32.mrf.mxu0
  %v187 = vpop.f32.mrf.mxu0
  %v188 = vadd.f32 %v52, %v187
  %v189 = vpop.f32.mrf.mxu0
  %190 = vmatprep.mubr.bf16.mxu0 0
  %191 = vmatmul.mubr.bf16.gmra.mxu0 %v87
  %v192 = vpop.f32.mrf.mxu0
  %v193 = vadd.f32 %v52, %v192
  %v194 = vpop.f32.mrf.mxu0
  %v195 = vpop.f32.mrf.mxu0
  %v196 = vadd.f32 %v52, %v195
  %v197 = vpop.f32.mrf.mxu0
  %198 = vmatprep.mubr.bf16.mxu0 0
  %199 = vmatmul.mubr.bf16.gmra.mxu0 %v88
  %v200 = vpop.f32.mrf.mxu0
  %v201 = vadd.f32 %v52, %v200
  %v202 = vpop.f32.mrf.mxu0
  %v203 = vpop.f32.mrf.mxu0
  %v204 = vadd.f32 %v52, %v203
  %v205 = vpop.f32.mrf.mxu0
  %206 = vmatprep.mubr.bf16.mxu0 0
  %207 = vmatmul.mubr.bf16.gmra.mxu0 %v89
  %v208 = vpop.f32.mrf.mxu0
  %v209 = vadd.f32 %v52, %v208
  %v210 = vpop.f32.mrf.mxu0
  %v211 = vpop.f32.mrf.mxu0
  %v212 = vadd.f32 %v52, %v211
  %v213 = vpop.f32.mrf.mxu0
  %214 = vmatprep.mubr.bf16.mxu0 0
  %215 = vmatmul.mubr.bf16.gmra.mxu0 %v90
  %v216 = vpop.f32.mrf.mxu0
  %v217 = vadd.f32 %v52, %v216
  %v218 = vpop.f32.mrf.mxu0
  %v219 = vpop.f32.mrf.mxu0
  %v220 = vadd.f32 %v52, %v219
  %v221 = vpop.f32.mrf.mxu0
  %222 = vmatprep.mubr.bf16.mxu0 0
  %223 = vmatmul.mubr.bf16.gmra.mxu0 %v91
  %v224 = vpop.f32.mrf.mxu0
  %v225 = vadd.f32 %v52, %v224
  %v226 = vpop.f32.mrf.mxu0
  %v227 = vpop.f32.mrf.mxu0
  %v228 = vadd.f32 %v52, %v227
  %v229 = vpop.f32.mrf.mxu0
  %230 = vmatprep.mubr.bf16.mxu0 0
  %231 = vmatmul.mubr.bf16.gmra.mxu0 %v92
  %v232 = vpop.f32.mrf.mxu0
  %v233 = vadd.f32 %v52, %v232
  %v234 = vpop.f32.mrf.mxu0
  %v235 = vpop.f32.mrf.mxu0
  %v236 = vadd.f32 %v52, %v235
  %v237 = vpop.f32.mrf.mxu0
  %238 = vmatprep.mubr.bf16.mxu0 0
  %239 = vmatmul.mubr.bf16.gmra.mxu0 %v93
  %v240 = vpop.f32.mrf.mxu0
  %v241 = vadd.f32 %v52, %v240
  %v242 = vpop.f32.mrf.mxu0
  %v243 = vpop.f32.mrf.mxu0
  %v244 = vadd.f32 %v52, %v243
  %v245 = vpop.f32.mrf.mxu0
  %246 = vdwg.mxu0
  %vm247 = vcmp.gt.f32.partialorder %v185, 0.0
  %vm248 = vcmp.gt.f32.partialorder %v188, 0.0
  %vm249 = vcmp.gt.f32.partialorder %v193, 0.0
  %vm250 = vcmp.gt.f32.partialorder %v196, 0.0
  %vm251 = vcmp.gt.f32.partialorder %v201, 0.0
  %vm252 = vcmp.gt.f32.partialorder %v204, 0.0
  %vm253 = vcmp.gt.f32.partialorder %v209, 0.0
  %vm254 = vcmp.gt.f32.partialorder %v212, 0.0
  %vm255 = vcmp.gt.f32.partialorder %v217, 0.0
  %vm256 = vcmp.gt.f32.partialorder %v220, 0.0
  %vm257 = vcmp.gt.f32.partialorder %v225, 0.0
  %vm258 = vcmp.gt.f32.partialorder %v228, 0.0
  %vm259 = vcmp.gt.f32.partialorder %v233, 0.0
  %vm260 = vcmp.gt.f32.partialorder %v236, 0.0
  %vm261 = vcmp.gt.f32.partialorder %v241, 0.0
  %vm262 = vcmp.gt.f32.partialorder %v244, 0.0
  %v263 = vmul.f32 %v185, 0.01
  %v264 = vmul.f32 %v188, 0.01
  %v265 = vmul.f32 %v193, 0.01
  %v266 = vmul.f32 %v196, 0.01
  %v267 = vmul.f32 %v201, 0.01
  %v268 = vmul.f32 %v204, 0.01
  %v269 = vmul.f32 %v209, 0.01
  %v270 = vmul.f32 %v212, 0.01
  %v271 = vmul.f32 %v217, 0.01
  %v272 = vmul.f32 %v220, 0.01
  %v273 = vmul.f32 %v225, 0.01
  %v274 = vmul.f32 %v228, 0.01
  %v275 = vmul.f32 %v233, 0.01
  %v276 = vmul.f32 %v236, 0.01
  %v277 = vmul.f32 %v241, 0.01
  %v278 = vmul.f32 %v244, 0.01
  %v279 = vsel %vm247, %v185, %v263
  %v280 = vsel %vm248, %v188, %v264
  %v281 = vsel %vm249, %v193, %v265
  %v282 = vsel %vm250, %v196, %v266
  %v283 = vsel %vm251, %v201, %v267
  %v284 = vsel %vm252, %v204, %v268
  %v285 = vsel %vm253, %v209, %v269
  %v286 = vsel %vm254, %v212, %v270
  %v287 = vsel %vm255, %v217, %v271
  %v288 = vsel %vm256, %v220, %v272
  %v289 = vsel %vm257, %v225, %v273
  %v290 = vsel %vm258, %v228, %v274
  %v291 = vsel %vm259, %v233, %v275
  %v292 = vsel %vm260, %v236, %v276
  %v293 = vsel %vm261, %v241, %v277
  %v294 = vsel %vm262, %v244, %v278
  %v295 = vpack.c.bf16 %v280, %v279
  %v296 = vpack.c.bf16 %v282, %v281
  %v297 = vpack.c.bf16 %v284, %v283
  %v298 = vpack.c.bf16 %v286, %v285
  %v299 = vpack.c.bf16 %v288, %v287
  %v300 = vpack.c.bf16 %v290, %v289
  %v301 = vpack.c.bf16 %v292, %v291
  %v302 = vpack.c.bf16 %v294, %v293
  %v311 = vunpack.c.l.b16 %v295
  %v312 = vunpack.c.h.b16 %v295
  %v313 = vunpack.c.l.b16 %v296
  %v314 = vunpack.c.h.b16 %v296
  %v315 = vunpack.c.l.b16 %v297
  %v316 = vunpack.c.h.b16 %v297
  %v317 = vunpack.c.l.b16 %v298
  %v318 = vunpack.c.h.b16 %v298
  %v319 = vunpack.c.l.b16 %v299
  %v320 = vunpack.c.h.b16 %v299
  %v321 = vunpack.c.l.b16 %v300
  %v322 = vunpack.c.h.b16 %v300
  %v323 = vunpack.c.l.b16 %v301
  %v324 = vunpack.c.h.b16 %v301
  %v325 = vunpack.c.l.b16 %v302
  %v326 = vunpack.c.h.b16 %v302
  %v327 = vpack.c.b16 %v311, %v311
  %v328 = vpack.c.b16 %v312, %v312
  %v329 = vpack.c.b16 %v313, %v313
  %v330 = vpack.c.b16 %v314, %v314
  %v331 = vpack.c.b16 %v315, %v315
  %v332 = vpack.c.b16 %v316, %v316
  %v333 = vpack.c.b16 %v317, %v317
  %v334 = vpack.c.b16 %v318, %v318
  %v335 = vpack.c.b16 %v319, %v319
  %v336 = vpack.c.b16 %v320, %v320
  %v337 = vpack.c.b16 %v321, %v321
  %v338 = vpack.c.b16 %v322, %v322
  %v339 = vpack.c.b16 %v323, %v323
  %v340 = vpack.c.b16 %v324, %v324
  %v341 = vpack.c.b16 %v325, %v325
  %v342 = vpack.c.b16 %v326, %v326
  %359 = vst [vmem:[%s3] sm:$0xf] %v327
  %360 = vst [vmem:[%s3 + $0x4] sm:$0xf] %v328
  %361 = vst [vmem:[%s3 + $0x8] sm:$0xf] %v329
  %362 = vst [vmem:[%s3 + $0xc] sm:$0xf] %v330
  %363 = vst [vmem:[%s3 + $0x10] sm:$0xf] %v331
  %364 = vst [vmem:[%s3 + $0x14] sm:$0xf] %v332
  %365 = vst [vmem:[%s3 + $0x18] sm:$0xf] %v333
  %366 = vst [vmem:[%s3 + $0x1c] sm:$0xf] %v334
  %367 = vst [vmem:[%s3 + $0x20] sm:$0xf] %v335
  %368 = vst [vmem:[%s3 + $0x24] sm:$0xf] %v336
  %369 = vst [vmem:[%s3 + $0x28] sm:$0xf] %v337
  %370 = vst [vmem:[%s3 + $0x2c] sm:$0xf] %v338
  %371 = vst [vmem:[%s3 + $0x30] sm:$0xf] %v339
  %372 = vst [vmem:[%s3 + $0x34] sm:$0xf] %v340
  %373 = vst [vmem:[%s3 + $0x38] sm:$0xf] %v341
  %374 = vst [vmem:[%s3 + $0x3c] sm:$0xf] %v342
  // Predicated region
  $region14: #{_lambda_.3} parent=0 // pred_check
    _
  $region15: #{_lambda_.3} parent=0 // pred_check_branch
    %376 = sbr.rel (0) target = $region17
  $region16: #{_lambda_.3} parent=0 // pred_region
    _
  $region17: #{_lambda_.3} parent=0 // pred_fallthru
    _
  // Predicated region
  $region18: #{_lambda_.3} parent=0 // pred_check
    _
  $region19: #{_lambda_.3} parent=0 // pred_check_branch
    %378 = sbr.rel (0) target = $region21
  $region20: #{_lambda_.3} parent=0 // pred_region
    _
  $region21: #{_lambda_.3} parent=0 // pred_fallthru
    _

// kernel: _lambda_.4
$region0: #{_lambda_.4}
  #allocation0 [shape = 'u32[]', space=smem, size = 0x4, offset = 0x4, fixed_abs, tag = 'smem constant byte address 0x4 - core index']
  #allocation1 [shape = 'u32[144,128]{1,0:T(1,128)}', space=vmem, size = 0x12000, scoped, tag = 'internal scratch']
  %s0 = inlined_call_operand.vmem [shape: bf16[32,128], index: 0, kind: input, shape index: {}]
  %s1 = inlined_call_operand.vmem [shape: bf16[128,128], index: 1, kind: input, shape index: {}]
  %s2 = inlined_call_operand.vmem [shape: f32[1,128], index: 2, kind: input, shape index: {}]
  %s3 = inlined_call_operand.vmem [shape: bf16[32,128], index: 3, kind: output, shape index: {}]
  %s4 = sld [smem:[#allocation0]]
  $region22: #{_lambda_.4} parent=0
    _
  %s6 = ssub.s32 1, %s4
  %s7 = scalar_select 0, %s6, %s4
  // Predicated region
  $region2: #{_lambda_.4} parent=0 // pred_check
    _
  $region3: #{_lambda_.4} parent=0 // pred_check_branch
    %9 = sbr.rel (0) target = $region5
  $region4: #{_lambda_.4} parent=0 // pred_region
    _
  $region5: #{_lambda_.4} parent=0 // pred_fallthru
    _
  // Predicated region
  $region6: #{_lambda_.4} parent=0 // pred_check
    _
  $region7: #{_lambda_.4} parent=0 // pred_check_branch
    %11 = sbr.rel (0) target = $region9
  $region8: #{_lambda_.4} parent=0 // pred_region
    _
  $region9: #{_lambda_.4} parent=0 // pred_fallthru
    _
  // Predicated region
  $region10: #{_lambda_.4} parent=0 // pred_check
    _
  $region11: #{_lambda_.4} parent=0 // pred_check_branch
    %13 = sbr.rel (0) target = $region13
  $region12: #{_lambda_.4} parent=0 // pred_region
    _
  $region13: #{_lambda_.4} parent=0 // pred_fallthru
    _
  %v15 = vld [vmem:[%s0] sm:$0xf]
  %v16 = vld [vmem:[%s0 + $0x4] sm:$0xf]
  %v17 = vld [vmem:[%s0 + $0x8] sm:$0xf]
  %v18 = vld [vmem:[%s0 + $0xc] sm:$0xf]
  %v19 = vld [vmem:[%s1] sm:$0xf]
  %v20 = vld [vmem:[%s1 + $0x4] sm:$0xf]
  %v21 = vld [vmem:[%s1 + $0x8] sm:$0xf]
  %v22 = vld [vmem:[%s1 + $0xc] sm:$0xf]
  %v23 = vld [vmem:[%s1 + $0x10] sm:$0xf]
  %v24 = vld [vmem:[%s1 + $0x14] sm:$0xf]
  %v25 = vld [vmem:[%s1 + $0x18] sm:$0xf]
  %v26 = vld [vmem:[%s1 + $0x1c] sm:$0xf]
  %v27 = vld [vmem:[%s1 + $0x20] sm:$0xf]
  %v28 = vld [vmem:[%s1 + $0x24] sm:$0xf]
  %v29 = vld [vmem:[%s1 + $0x28] sm:$0xf]
  %v30 = vld [vmem:[%s1 + $0x2c] sm:$0xf]
  %v31 = vld [vmem:[%s1 + $0x30] sm:$0xf]
  %v32 = vld [vmem:[%s1 + $0x34] sm:$0xf]
  %v33 = vld [vmem:[%s1 + $0x38] sm:$0xf]
  %v34 = vld [vmem:[%s1 + $0x3c] sm:$0xf]
  %v35 = vld [vmem:[%s2] sm:$0x1]
  %v37 = vlaneseq
  %v38 = vshrl.u32 %v37, 7
  %v39 = vsub.s32 0, %v38
  %v40 = vrot.slane %v35, %v39
  %v46 = vunpack.c.l.b16 %v15
  %v47 = vunpack.c.l.b16 %v16
  %v48 = vunpack.c.l.b16 %v17
  %v49 = vunpack.c.l.b16 %v18
  %v50 = vpack.c.b16 %v47, %v46
  %v51 = vpack.c.b16 %v49, %v48
  %v70 = vunpack.c.l.b16 %v19
  %v71 = vunpack.c.l.b16 %v20
  %v72 = vunpack.c.l.b16 %v21
  %v73 = vunpack.c.l.b16 %v22
  %v74 = vunpack.c.l.b16 %v23
  %v75 = vunpack.c.l.b16 %v24
  %v76 = vunpack.c.l.b16 %v25
  %v77 = vunpack.c.l.b16 %v26
  %v78 = vunpack.c.l.b16 %v27
  %v79 = vunpack.c.l.b16 %v28
  %v80 = vunpack.c.l.b16 %v29
  %v81 = vunpack.c.l.b16 %v30
  %v82 = vunpack.c.l.b16 %v31
  %v83 = vunpack.c.l.b16 %v32
  %v84 = vunpack.c.l.b16 %v33
  %v85 = vunpack.c.l.b16 %v34
  %v86 = vpack.c.b16 %v71, %v70
  %v87 = vpack.c.b16 %v73, %v72
  %v88 = vpack.c.b16 %v75, %v74
  %v89 = vpack.c.b16 %v77, %v76
  %v90 = vpack.c.b16 %v79, %v78
  %v91 = vpack.c.b16 %v81, %v80
  %v92 = vpack.c.b16 %v83, %v82
  %v93 = vpack.c.b16 %v85, %v84
  %102 = vmatprep.subr.bf16.mxu0 0
  %103 = vmatpush1.bf16.msra.mxu0 %v93
  %104 = vmatprep.subr.bf16.mxu0 0
  %105 = vmatpush1.bf16.msra.mxu0 %v92
  %106 = vmatprep.subr.bf16.mxu0 0
  %107 = vmatpush1.bf16.msra.mxu0 %v91
  %108 = vmatprep.subr.bf16.mxu0 0
  %109 = vmatpush1.bf16.msra.mxu0 %v90
  %110 = vmatprep.subr.bf16.mxu0 0
  %111 = vmatpush1.bf16.msra.mxu0 %v89
  %112 = vmatprep.subr.bf16.mxu0 0
  %113 = vmatpush1.bf16.msra.mxu0 %v88
  %114 = vmatprep.subr.bf16.mxu0 0
  %115 = vmatpush1.bf16.msra.mxu0 %v87
  %116 = vmatprep.subr.bf16.mxu0 0
  %117 = vmatpush1.bf16.msra.mxu0 %v86
  %118 = vmatprep.subr.bf16.mxu0 0
  %119 = vmatpush2.bf16.msra.mxu0 0
  %120 = vmatprep.subr.bf16.mxu0 0
  %121 = vmatpush2.bf16.msra.mxu0 0
  %122 = vmatprep.subr.bf16.mxu0 0
  %123 = vmatpush2.bf16.msra.mxu0 0
  %124 = vmatprep.subr.bf16.mxu0 0
  %125 = vmatpush2.bf16.msra.mxu0 0
  %126 = vmatprep.subr.bf16.mxu0 0
  %127 = vmatpush2.bf16.msra.mxu0 0
  %128 = vmatprep.subr.bf16.mxu0 0
  %129 = vmatpush2.bf16.msra.mxu0 0
  %130 = vmatprep.subr.bf16.mxu0 0
  %131 = vmatpush2.bf16.msra.mxu0 0
  %132 = vmatprep.subr.bf16.mxu0 0
  %133 = vmatpush2.bf16.msra.mxu0 0
  %134 = vmatprep.mubr.bf16.mxu0 0
  %135 = vmatmul.mubr.bf16.gmra.mxu0 %v50
  %v136 = vpop.f32.mrf.mxu0
  %v137 = vadd.f32 %v40, %v136
  %v138 = vpop.f32.mrf.mxu0
  %v139 = vpop.f32.mrf.mxu0
  %v140 = vadd.f32 %v40, %v139
  %v141 = vpop.f32.mrf.mxu0
  %142 = vmatprep.mubr.bf16.mxu0 0
  %143 = vmatmul.mubr.bf16.gmra.mxu0 %v51
  %v144 = vpop.f32.mrf.mxu0
  %v145 = vadd.f32 %v40, %v144
  %v146 = vpop.f32.mrf.mxu0
  %v147 = vpop.f32.mrf.mxu0
  %v148 = vadd.f32 %v40, %v147
  %v149 = vpop.f32.mrf.mxu0
  %150 = vdwg.mxu0
  %vm151 = vcmp.gt.f32.partialorder %v137, 0.0
  %vm152 = vcmp.gt.f32.partialorder %v140, 0.0
  %vm153 = vcmp.gt.f32.partialorder %v145, 0.0
  %vm154 = vcmp.gt.f32.partialorder %v148, 0.0
  %v155 = vmul.f32 %v137, 0.01
  %v156 = vmul.f32 %v140, 0.01
  %v157 = vmul.f32 %v145, 0.01
  %v158 = vmul.f32 %v148, 0.01
  %v159 = vsel %vm151, %v137, %v155
  %v160 = vsel %vm152, %v140, %v156
  %v161 = vsel %vm153, %v145, %v157
  %v162 = vsel %vm154, %v148, %v158
  %v163 = vpack.c.bf16 %v160, %v159
  %v164 = vpack.c.bf16 %v162, %v161
  %v167 = vunpack.c.l.b16 %v163
  %v168 = vunpack.c.h.b16 %v163
  %v169 = vunpack.c.l.b16 %v164
  %v170 = vunpack.c.h.b16 %v164
  %v171 = vpack.c.b16 %v167, %v167
  %v172 = vpack.c.b16 %v168, %v168
  %v173 = vpack.c.b16 %v169, %v169
  %v174 = vpack.c.b16 %v170, %v170
  %179 = vst [vmem:[%s3] sm:$0xf] %v171
  %180 = vst [vmem:[%s3 + $0x4] sm:$0xf] %v172
  %181 = vst [vmem:[%s3 + $0x8] sm:$0xf] %v173
  %182 = vst [vmem:[%s3 + $0xc] sm:$0xf] %v174
  // Predicated region
  $region14: #{_lambda_.4} parent=0 // pred_check
    _
  $region15: #{_lambda_.4} parent=0 // pred_check_branch
    %184 = sbr.rel (0) target = $region17
  $region16: #{_lambda_.4} parent=0 // pred_region
    _
  $region17: #{_lambda_.4} parent=0 // pred_fallthru
    _
  // Predicated region
  $region18: #{_lambda_.4} parent=0 // pred_check
    _
  $region19: #{_lambda_.4} parent=0 // pred_check_branch
    %186 = sbr.rel (0) target = $region21
  $region20: #{_lambda_.4} parent=0 // pred_region
    _
  $region21: #{_lambda_.4} parent=0 // pred_fallthru
    _

// kernel: _lambda_.5
$region0: #{_lambda_.5}
  #allocation0 [shape = 'u32[]', space=smem, size = 0x4, offset = 0x4, fixed_abs, tag = 'smem constant byte address 0x4 - core index']
  #allocation1 [shape = 'u32[144,128]{1,0:T(1,128)}', space=vmem, size = 0x12000, scoped, tag = 'internal scratch']
  %s0 = inlined_call_operand.vmem [shape: bf16[2,4,256], index: 0, kind: input, shape index: {}]
  %s1 = inlined_call_operand.vmem [shape: bf16[256,128], index: 1, kind: input, shape index: {}]
  %s2 = inlined_call_operand.vmem [shape: f32[1,128], index: 2, kind: input, shape index: {}]
  %s3 = inlined_call_operand.vmem [shape: bf16[4,128,128], index: 3, kind: input, shape index: {}]
  %s4 = inlined_call_operand.hbm [shape: f32[2,1,128], index: 4, kind: output, shape index: {}]
  %s5 = sld [smem:[#allocation0]]
  $region49: #{_lambda_.5} parent=0
    _
  %s7 = ssub.s32 1, %s5
  %s8 = scalar_select 0, %s7, %s5
  $region1: #{_lambda_.5} parent=0
    #allocation2 [shape = 'u8[1024]{0}', space=vmem, size = 0x400, scoped, tag = 'output window, operand 0']
    #allocation3 [shape = 's32[2]{0}', space=sflag, size = 0x8, scoped, tag = 'scoped memory for _lambda_.5']
    %9 = vsyncpa [#allocation3], 0
    %s10 = scalar_lea.sflag [#allocation3], 1
    %11 = vsyncpa %s10, 0
    loop: start=0, step=1, limit=4
    $region2: #{_lambda_.5} parent=1 // loop_pre_header
      _
    $region3: #{_lambda_.5} parent=1 // loop_header
      %s13 = sphi 0, %s17
      %p14 = scmp.ge.s32.totalorder %s13, 4
      %s23 = sphi 0, %s25
      %s26 = sphi 0, %s23
      %s27 = sphi 0, %s26
      %s43 = sphi 0, %s27
      %s47 = sphi 0, %s47
      %s49 = sphi 0, %s47
      %s50 = sphi 0, %s49
      %s64 = sphi 0, %s50
      %s68 = sphi 0, %s68
      %s70 = sphi 0, %s68
      %s71 = sphi 0, %s70
      %s85 = sphi 0, %s71
      %s89 = sphi 0, %s89
      %s91 = sphi 0, %s89
      %s92 = sphi 0, %s91
      %s106 = sphi 0, %s92
      %s112 = sphi 0, %s114
      %s115 = sphi 0, %s112
      %s116 = sphi 0, %s115
      %s132 = sphi 0, %s116
    $region4: #{_lambda_.5} parent=1 // loop_header_branch
      %16 = sbr.rel (%p14) target = $region8
    $region5: #{_lambda_.5} parent=1 // loop_body
      %s18 = ssub.s32 %s13, 1
      %s19 = ssub.s32 %s13, 2
      %s20 = sadd.s32 %s13, 1
      %s21 = ssub.s32 %s13, %s20
      %p22 = scmp.eq.s32.totalorder %s21, 0
      %s24 = sadd.s32 %s23, 1
      %s25 = scalar_select %p22, %s23, %s24
      %p28 = pneg %p22
      %p29 = scmp.eq.s32.totalorder %s13, 1
      %p30 = por %p28, %p29
      %p31 = scmp.ne.s32.totalorder %s23, %s26
      %p32 = scmp.eq.s32.totalorder %s13, 0
      %p33 = por %p31, %p32
      %p34 = scmp.ne.s32.totalorder %s23, %s26
      %p35 = scmp.eq.s32.totalorder %s18, 1
      %p36 = por %p34, %p35
      %p37 = scmp.ne.s32.totalorder %s26, %s27
      %p38 = scmp.eq.s32.totalorder %s18, 0
      %p39 = por %p37, %p38
      %p40 = scmp.ne.s32.totalorder %s26, %s27
      %p41 = scmp.eq.s32.totalorder %s19, 1
      %p42 = por %p40, %p41
      %p44 = scmp.ne.s32.totalorder %s27, %s43
      %p45 = scmp.eq.s32.totalorder %s19, 0
      %p46 = por %p44, %p45
      %s48 = sadd.s32 %s47, 1
      %p51 = scmp.eq.s32.totalorder %s13, 1
      %p52 = scmp.ne.s32.totalorder %s47, %s49
      %p53 = scmp.eq.s32.totalorder %s13, 0
      %p54 = por %p52, %p53
      %p55 = scmp.ne.s32.totalorder %s47, %s49
      %p56 = scmp.eq.s32.totalorder %s18, 1
      %p57 = por %p55, %p56
      %p58 = scmp.ne.s32.totalorder %s49, %s50
      %p59 = scmp.eq.s32.totalorder %s18, 0
      %p60 = por %p58, %p59
      %p61 = scmp.ne.s32.totalorder %s49, %s50
      %p62 = scmp.eq.s32.totalorder %s19, 1
      %p63 = por %p61, %p62
      %p65 = scmp.ne.s32.totalorder %s50, %s64
      %p66 = scmp.eq.s32.totalorder %s19, 0
      %p67 = por %p65, %p66
      %s69 = sadd.s32 %s68, 1
      %p72 = scmp.eq.s32.totalorder %s13, 1
      %p73 = scmp.ne.s32.totalorder %s68, %s70
      %p74 = scmp.eq.s32.totalorder %s13, 0
      %p75 = por %p73, %p74
      %p76 = scmp.ne.s32.totalorder %s68, %s70
      %p77 = scmp.eq.s32.totalorder %s18, 1
      %p78 = por %p76, %p77
      %p79 = scmp.ne.s32.totalorder %s70, %s71
      %p80 = scmp.eq.s32.totalorder %s18, 0
      %p81 = por %p79, %p80
      %p82 = scmp.ne.s32.totalorder %s70, %s71
      %p83 = scmp.eq.s32.totalorder %s19, 1
      %p84 = por %p82, %p83
      %p86 = scmp.ne.s32.totalorder %s71, %s85
      %p87 = scmp.eq.s32.totalorder %s19, 0
      %p88 = por %p86, %p87
      %s90 = sadd.s32 %s89, 1
      %p93 = scmp.eq.s32.totalorder %s13, 1
      %p94 = scmp.ne.s32.totalorder %s89, %s91
      %p95 = scmp.eq.s32.totalorder %s13, 0
      %p96 = por %p94, %p95
      %p97 = scmp.ne.s32.totalorder %s89, %s91
      %p98 = scmp.eq.s32.totalorder %s18, 1
      %p99 = por %p97, %p98
      %p100 = scmp.ne.s32.totalorder %s91, %s92
      %p101 = scmp.eq.s32.totalorder %s18, 0
      %p102 = por %p100, %p101
      %p103 = scmp.ne.s32.totalorder %s91, %s92
      %p104 = scmp.eq.s32.totalorder %s19, 1
      %p105 = por %p103, %p104
      %p107 = scmp.ne.s32.totalorder %s92, %s106
      %p108 = scmp.eq.s32.totalorder %s19, 0
      %p109 = por %p107, %p108
      %s110 = ssub.s32 %s13, %s20
      %p111 = scmp.eq.s32.totalorder %s110, 0
      %s113 = sadd.s32 %s112, 1
      %s114 = scalar_select %p111, %s112, %s113
      %p117 = pneg %p111
      %p118 = scmp.eq.s32.totalorder %s13, 1
      %p119 = por %p117, %p118
      %p120 = scmp.ne.s32.totalorder %s112, %s115
      %p121 = scmp.eq.s32.totalorder %s13, 0
      %p122 = por %p120, %p121
      %p123 = scmp.ne.s32.totalorder %s112, %s115
      %p124 = scmp.eq.s32.totalorder %s18, 1
      %p125 = por %p123, %p124
      %p126 = scmp.ne.s32.totalorder %s115, %s116
      %p127 = scmp.eq.s32.totalorder %s18, 0
      %p128 = por %p126, %p127
      %p129 = scmp.ne.s32.totalorder %s115, %s116
      %p130 = scmp.eq.s32.totalorder %s19, 1
      %p131 = por %p129, %p130
      %p133 = scmp.ne.s32.totalorder %s116, %s132
      %p134 = scmp.eq.s32.totalorder %s19, 0
      %p135 = por %p133, %p134
      %p136 = scmp.le.s32.totalorder 1, %s13
      %p137 = scmp.lt.s32.totalorder %s13, 3
      %p138 = pnand %p136, %p137
      %p139 = pneg %p138
      // Predicated region
      $region9: #{_lambda_.5} parent=5 // pred_check
        _
      $region10: #{_lambda_.5} parent=5 // pred_check_branch
        %141 = sbr.rel (%p138) target = $region12
      $region11: #{_lambda_.5} parent=5 // pred_region
        %s142 = ssub.s32 %s13, 1
        // Predicated region
        $region13: #{_lambda_.5} parent=11 // pred_check
          %p143 = pneg %p60
        $region14: #{_lambda_.5} parent=11 // pred_check_branch
          %145 = sbr.rel (%p143) target = $region16
        $region15: #{_lambda_.5} parent=11 // pred_region
          _
        $region16: #{_lambda_.5} parent=11 // pred_fallthru
          _
        // Predicated region
        $region17: #{_lambda_.5} parent=11 // pred_check
          %p146 = pneg %p81
        $region18: #{_lambda_.5} parent=11 // pred_check_branch
          %148 = sbr.rel (%p146) target = $region20
        $region19: #{_lambda_.5} parent=11 // pred_region
          _
        $region20: #{_lambda_.5} parent=11 // pred_fallthru
          _
        // Predicated region
        $region21: #{_lambda_.5} parent=11 // pred_check
          %p149 = pneg %p102
        $region22: #{_lambda_.5} parent=11 // pred_check_branch
          %151 = sbr.rel (%p149) target = $region24
        $region23: #{_lambda_.5} parent=11 // pred_region
          _
        $region24: #{_lambda_.5} parent=11 // pred_fallthru
          _
      $region12: #{_lambda_.5} parent=5 // pred_fallthru
        _
      %p152 = scmp.lt.s32.totalorder %s13, 2
      // Predicated region
      $region25: #{_lambda_.5} parent=5 // pred_check
        %p153 = pneg %p152
      $region26: #{_lambda_.5} parent=5 // pred_check_branch
        %155 = sbr.rel (%p153) target = $region28
      $region27: #{_lambda_.5} parent=5 // pred_region
        // Predicated region
        $region29: #{_lambda_.5} parent=27 // pred_check
          %p156 = pneg %p33
        $region30: #{_lambda_.5} parent=27 // pred_check_branch
          %158 = sbr.rel (%p156) target = $region32
        $region31: #{_lambda_.5} parent=27 // pred_region
          %p159 = scmp.lt.s32.totalorder %s13, 1
          %s160 = scalar_select %p159, %s13, 1
          %s161 = smul.addr %s160, 2
          %s162 = smul.addr %s161, 2
          %s163 = scalar_lea.vmem %s0, %s162
        $region32: #{_lambda_.5} parent=27 // pred_fallthru
          _
      $region28: #{_lambda_.5} parent=5 // pred_fallthru
        _
      %p164 = scmp.le.s32.totalorder 1, %s13
      %p165 = scmp.lt.s32.totalorder %s13, 3
      %p166 = pnand %p164, %p165
      %p167 = pneg %p166
      // Predicated region
      $region33: #{_lambda_.5} parent=5 // pred_check
        _
      $region34: #{_lambda_.5} parent=5 // pred_check_branch
        %169 = sbr.rel (%p166) target = $region36
      $region35: #{_lambda_.5} parent=5 // pred_region
        %s170 = ssub.s32 %s13, 1
        %p171 = scmp.lt.s32.totalorder %s18, 1
        %s172 = scalar_select %p171, %s18, 1
        %s173 = smul.addr %s172, 2
        %s174 = smul.addr %s173, 2
        %s175 = scalar_lea.vmem %s0, %s174
        %p176 = pneg %p39
        %p177 = pneg %p36
        %p178 = pneg %p60
        %p179 = pneg %p57
        %p180 = pneg %p81
        %p181 = pneg %p78
        %p182 = pneg %p102
        %p183 = pneg %p99
        %p184 = pneg %p128
        %p185 = pneg %p125
        %s186 = sand.u32 %s115, 1
        %s187 = scalar_lea.sflag [#allocation3], %s186
        %s188 = sand.u32 %s115, 1
        %s189 = scalar_lea.vmem [#allocation2], %s188
        %p190 = scmp.lt.s32.totalorder %s18, 1
        %s191 = scalar_select %p190, %s18, 1
        %s192 = smul.addr %s191, 2
        %s193 = smul.addr %s192, 2
        %s194 = scalar_lea.vmem %s0, %s193
        %v196 = vld [vmem:[%s194] sm:$0xf]
        %v197 = vld [vmem:[%s1] sm:$0xf]
        %v198 = vld [vmem:[%s1 + $0x4] sm:$0xf]
        %v199 = vld [vmem:[%s1 + $0x8] sm:$0xf]
        %v200 = vld [vmem:[%s1 + $0xc] sm:$0xf]
        %v201 = vld [vmem:[%s1 + $0x10] sm:$0xf]
        %v202 = vld [vmem:[%s1 + $0x14] sm:$0xf]
        %v203 = vld [vmem:[%s1 + $0x18] sm:$0xf]
        %v204 = vld [vmem:[%s1 + $0x1c] sm:$0xf]
        %v205 = vld [vmem:[%s1 + $0x20] sm:$0xf]
        %v206 = vld [vmem:[%s1 + $0x24] sm:$0xf]
        %v207 = vld [vmem:[%s1 + $0x28] sm:$0xf]
        %v208 = vld [vmem:[%s1 + $0x2c] sm:$0xf]
        %v209 = vld [vmem:[%s1 + $0x30] sm:$0xf]
        %v210 = vld [vmem:[%s1 + $0x34] sm:$0xf]
        %v211 = vld [vmem:[%s1 + $0x38] sm:$0xf]
        %v212 = vld [vmem:[%s1 + $0x3c] sm:$0xf]
        %v213 = vld [vmem:[%s1 + $0x40] sm:$0xf]
        %v214 = vld [vmem:[%s1 + $0x44] sm:$0xf]
        %v215 = vld [vmem:[%s1 + $0x48] sm:$0xf]
        %v216 = vld [vmem:[%s1 + $0x4c] sm:$0xf]
        %v217 = vld [vmem:[%s1 + $0x50] sm:$0xf]
        %v218 = vld [vmem:[%s1 + $0x54] sm:$0xf]
        %v219 = vld [vmem:[%s1 + $0x58] sm:$0xf]
        %v220 = vld [vmem:[%s1 + $0x5c] sm:$0xf]
        %v221 = vld [vmem:[%s1 + $0x60] sm:$0xf]
        %v222 = vld [vmem:[%s1 + $0x64] sm:$0xf]
        %v223 = vld [vmem:[%s1 + $0x68] sm:$0xf]
        %v224 = vld [vmem:[%s1 + $0x6c] sm:$0xf]
        %v225 = vld [vmem:[%s1 + $0x70] sm:$0xf]
        %v226 = vld [vmem:[%s1 + $0x74] sm:$0xf]
        %v227 = vld [vmem:[%s1 + $0x78] sm:$0xf]
        %v228 = vld [vmem:[%s1 + $0x7c] sm:$0xf]
        %v229 = vld [vmem:[%s2] sm:$0x1]
        %v231 = vlaneseq
        %v232 = vshrl.u32 %v231, 7
        %v233 = vsub.s32 0, %v232
        %v234 = vrot.slane %v229, %v233
        %v238 = vunpack.c.l.s4 1983009808
        %v239 = vunpack.c.0.s8 %v238
        %v240 = vlaneseq
        %v241 = vshrl.u32 %v240, 7
        %v242 = vsub.s32 %v239, %v241
        %v243 = vrot.slane %v196, %v242
        %v244 = vcombine.high %v243, %v243
        %v279 = vunpack.c.l.b16 %v197
        %v280 = vunpack.c.l.b16 %v198
        %v281 = vunpack.c.l.b16 %v199
        %v282 = vunpack.c.l.b16 %v200
        %v283 = vunpack.c.l.b16 %v201
        %v284 = vunpack.c.l.b16 %v202
        %v285 = vunpack.c.l.b16 %v203
        %v286 = vunpack.c.l.b16 %v204
        %v287 = vunpack.c.l.b16 %v205
        %v288 = vunpack.c.l.b16 %v206
        %v289 = vunpack.c.l.b16 %v207
        %v290 = vunpack.c.l.b16 %v208
        %v291 = vunpack.c.l.b16 %v209
        %v292 = vunpack.c.l.b16 %v210
        %v293 = vunpack.c.l.b16 %v211
        %v294 = vunpack.c.l.b16 %v212
        %v295 = vunpack.c.l.b16 %v213
        %v296 = vunpack.c.l.b16 %v214
        %v297 = vunpack.c.l.b16 %v215
        %v298 = vunpack.c.l.b16 %v216
        %v299 = vunpack.c.l.b16 %v217
        %v300 = vunpack.c.l.b16 %v218
        %v301 = vunpack.c.l.b16 %v219
        %v302 = vunpack.c.l.b16 %v220
        %v303 = vunpack.c.l.b16 %v221
        %v304 = vunpack.c.l.b16 %v222
        %v305 = vunpack.c.l.b16 %v223
        %v306 = vunpack.c.l.b16 %v224
        %v307 = vunpack.c.l.b16 %v225
        %v308 = vunpack.c.l.b16 %v226
        %v309 = vunpack.c.l.b16 %v227
        %v310 = vunpack.c.l.b16 %v228
        %v311 = vpack.c.b16 %v280, %v279
        %v312 = vpack.c.b16 %v282, %v281
        %v313 = vpack.c.b16 %v284, %v283
        %v314 = vpack.c.b16 %v286, %v285
        %v315 = vpack.c.b16 %v288, %v287
        %v316 = vpack.c.b16 %v290, %v289
        %v317 = vpack.c.b16 %v292, %v291
        %v318 = vpack.c.b16 %v294, %v293
        %v319 = vpack.c.b16 %v296, %v295
        %v320 = vpack.c.b16 %v298, %v297
        %v321 = vpack.c.b16 %v300, %v299
        %v322 = vpack.c.b16 %v302, %v301
        %v323 = vpack.c.b16 %v304, %v303
        %v324 = vpack.c.b16 %v306, %v305
        %v325 = vpack.c.b16 %v308, %v307
        %v326 = vpack.c.b16 %v310, %v309
        %343 = vmatprep.subr.bf16.mxu0 0
        %344 = vmatpush1.bf16.msra.mxu0 %v318
        %345 = vmatprep.subr.bf16.mxu0 0
        %346 = vmatpush1.bf16.msra.mxu0 %v317
        %347 = vmatprep.subr.bf16.mxu0 0
        %348 = vmatpush1.bf16.msra.mxu0 %v316
        %349 = vmatprep.subr.bf16.mxu0 0
        %350 = vmatpush1.bf16.msra.mxu0 %v315
        %351 = vmatprep.subr.bf16.mxu0 0
        %352 = vmatpush1.bf16.msra.mxu0 %v314
        %353 = vmatprep.subr.bf16.mxu0 0
        %354 = vmatpush1.bf16.msra.mxu0 %v313
        %355 = vmatprep.subr.bf16.mxu0 0
        %356 = vmatpush1.bf16.msra.mxu0 %v312
        %357 = vmatprep.subr.bf16.mxu0 0
        %358 = vmatpush1.bf16.msra.mxu0 %v311
        %359 = vmatprep.subr.bf16.mxu0 0
        %360 = vmatpush2.bf16.msra.mxu0 %v326
        %361 = vmatprep.subr.bf16.mxu0 0
        %362 = vmatpush2.bf16.msra.mxu0 %v325
        %363 = vmatprep.subr.bf16.mxu0 0
        %364 = vmatpush2.bf16.msra.mxu0 %v324
        %365 = vmatprep.subr.bf16.mxu0 0
        %366 = vmatpush2.bf16.msra.mxu0 %v323
        %367 = vmatprep.subr.bf16.mxu0 0
        %368 = vmatpush2.bf16.msra.mxu0 %v322
        %369 = vmatprep.subr.bf16.mxu0 0
        %370 = vmatpush2.bf16.msra.mxu0 %v321
        %371 = vmatprep.subr.bf16.mxu0 0
        %372 = vmatpush2.bf16.msra.mxu0 %v320
        %373 = vmatprep.subr.bf16.mxu0 0
        %374 = vmatpush2.bf16.msra.mxu0 %v319
        %375 = vmatprep.mubr.bf16.mxu0 %v244
        %376 = vmatmul.mubr.bf16.gmra.mxu0 %v243
        %v377 = vpop.f32.mrf.mxu0
        %v378 = vadd.f32 %v234, %v377
        %v379 = vpop.f32.mrf.mxu0
        %v380 = vpop.f32.mrf.mxu0
        %v381 = vpop.f32.mrf.mxu0
        %382 = vdwg.mxu0
        %vm383 = vcmp.gt.f32.partialorder %v378, 0.0
        %v384 = vmul.f32 %v378, 0.01
        %v385 = vsel %vm383, %v378, %v384
        %v386 = vpack.c.bf16 %v385, %v385
        %v387 = vld [vmem:[%s3] sm:$0xf]
        %v388 = vld [vmem:[%s3 + $0x4] sm:$0xf]
        %v389 = vld [vmem:[%s3 + $0x8] sm:$0xf]
        %v390 = vld [vmem:[%s3 + $0xc] sm:$0xf]
        %v391 = vld [vmem:[%s3 + $0x10] sm:$0xf]
        %v392 = vld [vmem:[%s3 + $0x14] sm:$0xf]
        %v393 = vld [vmem:[%s3 + $0x18] sm:$0xf]
        %v394 = vld [vmem:[%s3 + $0x1c] sm:$0xf]
        %v395 = vld [vmem:[%s3 + $0x20] sm:$0xf]
        %v396 = vld [vmem:[%s3 + $0x24] sm:$0xf]
        %v397 = vld [vmem:[%s3 + $0x28] sm:$0xf]
        %v398 = vld [vmem:[%s3 + $0x2c] sm:$0xf]
        %v399 = vld [vmem:[%s3 + $0x30] sm:$0xf]
        %v400 = vld [vmem:[%s3 + $0x34] sm:$0xf]
        %v401 = vld [vmem:[%s3 + $0x38] sm:$0xf]
        %v402 = vld [vmem:[%s3 + $0x3c] sm:$0xf]
        %s403 = scalar_lea.vmem %s3, 64
        %v404 = vld [vmem:[%s403] sm:$0xf]
        %v405 = vld [vmem:[%s403 + $0x4] sm:$0xf]
        %v406 = vld [vmem:[%s403 + $0x8] sm:$0xf]
        %v407 = vld [vmem:[%s403 + $0xc] sm:$0xf]
        %v408 = vld [vmem:[%s403 + $0x10] sm:$0xf]
        %v409 = vld [vmem:[%s403 + $0x14] sm:$0xf]
        %v410 = vld [vmem:[%s403 + $0x18] sm:$0xf]
        %v411 = vld [vmem:[%s403 + $0x1c] sm:$0xf]
        %v412 = vld [vmem:[%s403 + $0x20] sm:$0xf]
        %v413 = vld [vmem:[%s403 + $0x24] sm:$0xf]
        %v414 = vld [vmem:[%s403 + $0x28] sm:$0xf]
        %v415 = vld [vmem:[%s403 + $0x2c] sm:$0xf]
        %v416 = vld [vmem:[%s403 + $0x30] sm:$0xf]
        %v417 = vld [vmem:[%s403 + $0x34] sm:$0xf]
        %v418 = vld [vmem:[%s403 + $0x38] sm:$0xf]
        %v419 = vld [vmem:[%s403 + $0x3c] sm:$0xf]
        %v421 = vshrl.u32 %v386, 16
        %v440 = vunpack.c.l.b16 %v404
        %v441 = vunpack.c.l.b16 %v405
        %v442 = vunpack.c.l.b16 %v406
        %v443 = vunpack.c.l.b16 %v407
        %v444 = vunpack.c.l.b16 %v408
        %v445 = vunpack.c.l.b16 %v409
        %v446 = vunpack.c.l.b16 %v410
        %v447 = vunpack.c.l.b16 %v411
        %v448 = vunpack.c.l.b16 %v412
        %v449 = vunpack.c.l.b16 %v413
        %v450 = vunpack.c.l.b16 %v414
        %v451 = vunpack.c.l.b16 %v415
        %v452 = vunpack.c.l.b16 %v416
        %v453 = vunpack.c.l.b16 %v417
        %v454 = vunpack.c.l.b16 %v418
        %v455 = vunpack.c.l.b16 %v419
        %v456 = vpack.c.b16 %v441, %v440
        %v457 = vpack.c.b16 %v443, %v442
        %v458 = vpack.c.b16 %v445, %v444
        %v459 = vpack.c.b16 %v447, %v446
        %v460 = vpack.c.b16 %v449, %v448
        %v461 = vpack.c.b16 %v451, %v450
        %v462 = vpack.c.b16 %v453, %v452
        %v463 = vpack.c.b16 %v455, %v454
        %472 = vmatprep.subr.bf16.mxu0 0
        %473 = vmatpush1.bf16.msra.mxu0 %v463
        %474 = vmatprep.subr.bf16.mxu0 0
        %475 = vmatpush1.bf16.msra.mxu0 %v462
        %476 = vmatprep.subr.bf16.mxu0 0
        %477 = vmatpush1.bf16.msra.mxu0 %v461
        %478 = vmatprep.subr.bf16.mxu0 0
        %479 = vmatpush1.bf16.msra.mxu0 %v460
        %480 = vmatprep.subr.bf16.mxu0 0
        %481 = vmatpush1.bf16.msra.mxu0 %v459
        %482 = vmatprep.subr.bf16.mxu0 0
        %483 = vmatpush1.bf16.msra.mxu0 %v458
        %484 = vmatprep.subr.bf16.mxu0 0
        %485 = vmatpush1.bf16.msra.mxu0 %v457
        %486 = vmatprep.subr.bf16.mxu0 0
        %487 = vmatpush1.bf16.msra.mxu0 %v456
        %488 = vmatprep.subr.bf16.mxu0 0
        %489 = vmatpush2.bf16.msra.mxu0 0
        %490 = vmatprep.subr.bf16.mxu0 0
        %491 = vmatpush2.bf16.msra.mxu0 0
        %492 = vmatprep.subr.bf16.mxu0 0
        %493 = vmatpush2.bf16.msra.mxu0 0
        %494 = vmatprep.subr.bf16.mxu0 0
        %495 = vmatpush2.bf16.msra.mxu0 0
        %496 = vmatprep.subr.bf16.mxu0 0
        %497 = vmatpush2.bf16.msra.mxu0 0
        %498 = vmatprep.subr.bf16.mxu0 0
        %499 = vmatpush2.bf16.msra.mxu0 0
        %500 = vmatprep.subr.bf16.mxu0 0
        %501 = vmatpush2.bf16.msra.mxu0 0
        %502 = vmatprep.subr.bf16.mxu0 0
        %503 = vmatpush2.bf16.msra.mxu0 0
        %504 = vmatprep.mubr.bf16.mxu0 0
        %505 = vmatmul.mubr.bf16.gmra.mxu0 %v421
        %v506 = vpop.f32.mrf.mxu0
        %v507 = vadd.f32 0.0, %v506
        %v508 = vpop.f32.mrf.mxu0
        %v509 = vpop.f32.mrf.mxu0
        %v510 = vpop.f32.mrf.mxu0
        %511 = vdwg.mxu0
        %v528 = vunpack.c.l.b16 %v387
        %v529 = vunpack.c.l.b16 %v388
        %v530 = vunpack.c.l.b16 %v389
        %v531 = vunpack.c.l.b16 %v390
        %v532 = vunpack.c.l.b16 %v391
        %v533 = vunpack.c.l.b16 %v392
        %v534 = vunpack.c.l.b16 %v393
        %v535 = vunpack.c.l.b16 %v394
        %v536 = vunpack.c.l.b16 %v395
        %v537 = vunpack.c.l.b16 %v396
        %v538 = vunpack.c.l.b16 %v397
        %v539 = vunpack.c.l.b16 %v398
        %v540 = vunpack.c.l.b16 %v399
        %v541 = vunpack.c.l.b16 %v400
        %v542 = vunpack.c.l.b16 %v401
        %v543 = vunpack.c.l.b16 %v402
        %v544 = vpack.c.b16 %v529, %v528
        %v545 = vpack.c.b16 %v531, %v530
        %v546 = vpack.c.b16 %v533, %v532
        %v547 = vpack.c.b16 %v535, %v534
        %v548 = vpack.c.b16 %v537, %v536
        %v549 = vpack.c.b16 %v539, %v538
        %v550 = vpack.c.b16 %v541, %v540
        %v551 = vpack.c.b16 %v543, %v542
        %560 = vmatprep.subr.bf16.mxu0 0
        %561 = vmatpush1.bf16.msra.mxu0 %v551
        %562 = vmatprep.subr.bf16.mxu0 0
        %563 = vmatpush1.bf16.msra.mxu0 %v550
        %564 = vmatprep.subr.bf16.mxu0 0
        %565 = vmatpush1.bf16.msra.mxu0 %v549
        %566 = vmatprep.subr.bf16.mxu0 0
        %567 = vmatpush1.bf16.msra.mxu0 %v548
        %568 = vmatprep.subr.bf16.mxu0 0
        %569 = vmatpush1.bf16.msra.mxu0 %v547
        %570 = vmatprep.subr.bf16.mxu0 0
        %571 = vmatpush1.bf16.msra.mxu0 %v546
        %572 = vmatprep.subr.bf16.mxu0 0
        %573 = vmatpush1.bf16.msra.mxu0 %v545
        %574 = vmatprep.subr.bf16.mxu0 0
        %575 = vmatpush1.bf16.msra.mxu0 %v544
        %576 = vmatprep.subr.bf16.mxu0 0
        %577 = vmatpush2.bf16.msra.mxu0 0
        %578 = vmatprep.subr.bf16.mxu0 0
        %579 = vmatpush2.bf16.msra.mxu0 0
        %580 = vmatprep.subr.bf16.mxu0 0
        %581 = vmatpush2.bf16.msra.mxu0 0
        %582 = vmatprep.subr.bf16.mxu0 0
        %583 = vmatpush2.bf16.msra.mxu0 0
        %584 = vmatprep.subr.bf16.mxu0 0
        %585 = vmatpush2.bf16.msra.mxu0 0
        %586 = vmatprep.subr.bf16.mxu0 0
        %587 = vmatpush2.bf16.msra.mxu0 0
        %588 = vmatprep.subr.bf16.mxu0 0
        %589 = vmatpush2.bf16.msra.mxu0 0
        %590 = vmatprep.subr.bf16.mxu0 0
        %591 = vmatpush2.bf16.msra.mxu0 0
        %592 = vmatprep.mubr.bf16.mxu0 0
        %593 = vmatmul.mubr.bf16.gmra.mxu0 %v386
        %v594 = vpop.f32.mrf.mxu0
        %v595 = vadd.f32 %v507, %v594
        %v596 = vpop.f32.mrf.mxu0
        %v597 = vpop.f32.mrf.mxu0
        %v598 = vpop.f32.mrf.mxu0
        %599 = vdwg.mxu0
        %s600 = scalar_lea.vmem %s3, 128
        %v601 = vld [vmem:[%s600] sm:$0xf]
        %v602 = vld [vmem:[%s600 + $0x4] sm:$0xf]
        %v603 = vld [vmem:[%s600 + $0x8] sm:$0xf]
        %v604 = vld [vmem:[%s600 + $0xc] sm:$0xf]
        %v605 = vld [vmem:[%s600 + $0x10] sm:$0xf]
        %v606 = vld [vmem:[%s600 + $0x14] sm:$0xf]
        %v607 = vld [vmem:[%s600 + $0x18] sm:$0xf]
        %v608 = vld [vmem:[%s600 + $0x1c] sm:$0xf]
        %v609 = vld [vmem:[%s600 + $0x20] sm:$0xf]
        %v610 = vld [vmem:[%s600 + $0x24] sm:$0xf]
        %v611 = vld [vmem:[%s600 + $0x28] sm:$0xf]
        %v612 = vld [vmem:[%s600 + $0x2c] sm:$0xf]
        %v613 = vld [vmem:[%s600 + $0x30] sm:$0xf]
        %v614 = vld [vmem:[%s600 + $0x34] sm:$0xf]
        %v615 = vld [vmem:[%s600 + $0x38] sm:$0xf]
        %v616 = vld [vmem:[%s600 + $0x3c] sm:$0xf]
        %v618 = vrot.slane %v386, 1
        %v636 = vunpack.c.l.b16 %v601
        %v637 = vunpack.c.l.b16 %v602
        %v638 = vunpack.c.l.b16 %v603
        %v639 = vunpack.c.l.b16 %v604
        %v640 = vunpack.c.l.b16 %v605
        %v641 = vunpack.c.l.b16 %v606
        %v642 = vunpack.c.l.b16 %v607
        %v643 = vunpack.c.l.b16 %v608
        %v644 = vunpack.c.l.b16 %v609
        %v645 = vunpack.c.l.b16 %v610
        %v646 = vunpack.c.l.b16 %v611
        %v647 = vunpack.c.l.b16 %v612
        %v648 = vunpack.c.l.b16 %v613
        %v649 = vunpack.c.l.b16 %v614
        %v650 = vunpack.c.l.b16 %v615
        %v651 = vunpack.c.l.b16 %v616
        %v652 = vpack.c.b16 %v637, %v636
        %v653 = vpack.c.b16 %v639, %v638
        %v654 = vpack.c.b16 %v641, %v640
        %v655 = vpack.c.b16 %v643, %v642
        %v656 = vpack.c.b16 %v645, %v644
        %v657 = vpack.c.b16 %v647, %v646
        %v658 = vpack.c.b16 %v649, %v648
        %v659 = vpack.c.b16 %v651, %v650
        %668 = vmatprep.subr.bf16.mxu0 0
        %669 = vmatpush1.bf16.msra.mxu0 %v659
        %670 = vmatprep.subr.bf16.mxu0 0
        %671 = vmatpush1.bf16.msra.mxu0 %v658
        %672 = vmatprep.subr.bf16.mxu0 0
        %673 = vmatpush1.bf16.msra.mxu0 %v657
        %674 = vmatprep.subr.bf16.mxu0 0
        %675 = vmatpush1.bf16.msra.mxu0 %v656
        %676 = vmatprep.subr.bf16.mxu0 0
        %677 = vmatpush1.bf16.msra.mxu0 %v655
        %678 = vmatprep.subr.bf16.mxu0 0
        %679 = vmatpush1.bf16.msra.mxu0 %v654
        %680 = vmatprep.subr.bf16.mxu0 0
        %681 = vmatpush1.bf16.msra.mxu0 %v653
        %682 = vmatprep.subr.bf16.mxu0 0
        %683 = vmatpush1.bf16.msra.mxu0 %v652
        %684 = vmatprep.subr.bf16.mxu0 0
        %685 = vmatpush2.bf16.msra.mxu0 0
        %686 = vmatprep.subr.bf16.mxu0 0
        %687 = vmatpush2.bf16.msra.mxu0 0
        %688 = vmatprep.subr.bf16.mxu0 0
        %689 = vmatpush2.bf16.msra.mxu0 0
        %690 = vmatprep.subr.bf16.mxu0 0
        %691 = vmatpush2.bf16.msra.mxu0 0
        %692 = vmatprep.subr.bf16.mxu0 0
        %693 = vmatpush2.bf16.msra.mxu0 0
        %694 = vmatprep.subr.bf16.mxu0 0
        %695 = vmatpush2.bf16.msra.mxu0 0
        %696 = vmatprep.subr.bf16.mxu0 0
        %697 = vmatpush2.bf16.msra.mxu0 0
        %698 = vmatprep.subr.bf16.mxu0 0
        %699 = vmatpush2.bf16.msra.mxu0 0
        %700 = vmatprep.mubr.bf16.mxu0 0
        %701 = vmatmul.mubr.bf16.gmra.mxu0 %v618
        %v702 = vpop.f32.mrf.mxu0
        %v703 = vadd.f32 0.0, %v702
        %v704 = vpop.f32.mrf.mxu0
        %v705 = vpop.f32.mrf.mxu0
        %v706 = vpop.f32.mrf.mxu0
        %707 = vdwg.mxu0
        %v708 = vadd.f32 %v595, %v703
        %s709 = scalar_lea.vmem %s3, 192
        %v710 = vld [vmem:[%s709] sm:$0xf]
        %v711 = vld [vmem:[%s709 + $0x4] sm:$0xf]
        %v712 = vld [vmem:[%s709 + $0x8] sm:$0xf]
        %v713 = vld [vmem:[%s709 + $0xc] sm:$0xf]
        %v714 = vld [vmem:[%s709 + $0x10] sm:$0xf]
        %v715 = vld [vmem:[%s709 + $0x14] sm:$0xf]
        %v716 = vld [vmem:[%s709 + $0x18] sm:$0xf]
        %v717 = vld [vmem:[%s709 + $0x1c] sm:$0xf]
        %v718 = vld [vmem:[%s709 + $0x20] sm:$0xf]
        %v719 = vld [vmem:[%s709 + $0x24] sm:$0xf]
        %v720 = vld [vmem:[%s709 + $0x28] sm:$0xf]
        %v721 = vld [vmem:[%s709 + $0x2c] sm:$0xf]
        %v722 = vld [vmem:[%s709 + $0x30] sm:$0xf]
        %v723 = vld [vmem:[%s709 + $0x34] sm:$0xf]
        %v724 = vld [vmem:[%s709 + $0x38] sm:$0xf]
        %v725 = vld [vmem:[%s709 + $0x3c] sm:$0xf]
        %v726 = vrot.slane %v421, 1
        %v744 = vunpack.c.l.b16 %v710
        %v745 = vunpack.c.l.b16 %v711
        %v746 = vunpack.c.l.b16 %v712
        %v747 = vunpack.c.l.b16 %v713
        %v748 = vunpack.c.l.b16 %v714
        %v749 = vunpack.c.l.b16 %v715
        %v750 = vunpack.c.l.b16 %v716
        %v751 = vunpack.c.l.b16 %v717
        %v752 = vunpack.c.l.b16 %v718
        %v753 = vunpack.c.l.b16 %v719
        %v754 = vunpack.c.l.b16 %v720
        %v755 = vunpack.c.l.b16 %v721
        %v756 = vunpack.c.l.b16 %v722
        %v757 = vunpack.c.l.b16 %v723
        %v758 = vunpack.c.l.b16 %v724
        %v759 = vunpack.c.l.b16 %v725
        %v760 = vpack.c.b16 %v745, %v744
        %v761 = vpack.c.b16 %v747, %v746
        %v762 = vpack.c.b16 %v749, %v748
        %v763 = vpack.c.b16 %v751, %v750
        %v764 = vpack.c.b16 %v753, %v752
        %v765 = vpack.c.b16 %v755, %v754
        %v766 = vpack.c.b16 %v757, %v756
        %v767 = vpack.c.b16 %v759, %v758
        %776 = vmatprep.subr.bf16.mxu0 0
        %777 = vmatpush1.bf16.msra.mxu0 %v767
        %778 = vmatprep.subr.bf16.mxu0 0
        %779 = vmatpush1.bf16.msra.mxu0 %v766
        %780 = vmatprep.subr.bf16.mxu0 0
        %781 = vmatpush1.bf16.msra.mxu0 %v765
        %782 = vmatprep.subr.bf16.mxu0 0
        %783 = vmatpush1.bf16.msra.mxu0 %v764
        %784 = vmatprep.subr.bf16.mxu0 0
        %785 = vmatpush1.bf16.msra.mxu0 %v763
        %786 = vmatprep.subr.bf16.mxu0 0
        %787 = vmatpush1.bf16.msra.mxu0 %v762
        %788 = vmatprep.subr.bf16.mxu0 0
        %789 = vmatpush1.bf16.msra.mxu0 %v761
        %790 = vmatprep.subr.bf16.mxu0 0
        %791 = vmatpush1.bf16.msra.mxu0 %v760
        %792 = vmatprep.subr.bf16.mxu0 0
        %793 = vmatpush2.bf16.msra.mxu0 0
        %794 = vmatprep.subr.bf16.mxu0 0
        %795 = vmatpush2.bf16.msra.mxu0 0
        %796 = vmatprep.subr.bf16.mxu0 0
        %797 = vmatpush2.bf16.msra.mxu0 0
        %798 = vmatprep.subr.bf16.mxu0 0
        %799 = vmatpush2.bf16.msra.mxu0 0
        %800 = vmatprep.subr.bf16.mxu0 0
        %801 = vmatpush2.bf16.msra.mxu0 0
        %802 = vmatprep.subr.bf16.mxu0 0
        %803 = vmatpush2.bf16.msra.mxu0 0
        %804 = vmatprep.subr.bf16.mxu0 0
        %805 = vmatpush2.bf16.msra.mxu0 0
        %806 = vmatprep.subr.bf16.mxu0 0
        %807 = vmatpush2.bf16.msra.mxu0 0
        %808 = vmatprep.mubr.bf16.mxu0 0
        %809 = vmatmul.mubr.bf16.gmra.mxu0 %v726
        %v810 = vpop.f32.mrf.mxu0
        %v811 = vadd.f32 0.0, %v810
        %v812 = vpop.f32.mrf.mxu0
        %v813 = vpop.f32.mrf.mxu0
        %v814 = vpop.f32.mrf.mxu0
        %815 = vdwg.mxu0
        %v816 = vadd.f32 %v708, %v811
        %817 = vst [vmem:[%s189] sm:$0x1] %v816
        %s818 = sand.u32 %s115, 1
        %s819 = scalar_lea.sflag [#allocation3], %s818
        %s820 = sand.u32 %s115, 1
        %s821 = scalar_lea.vmem [#allocation2], %s820
        // Predicated region
        $region37: #{_lambda_.5} parent=35 // pred_check
          %p822 = pneg %p125
        $region38: #{_lambda_.5} parent=35 // pred_check_branch
          %824 = sbr.rel (%p822) target = $region40
        $region39: #{_lambda_.5} parent=35 // pred_region
          %s826 = ssub.s32 16, 16
          %827 = vsyncadd %s819, %s826
          %s828 = smul.addr %s18, 16
          %s829 = scalar_lea.hbm %s4, %s828
          %s831 = sshll.u32 %s821, 4
          %s832 = int_to_ptr.vmem [resolvable:$true] %s831
          %834 = dma.vmem_to_hbm [thread:$0]  %s832, 16, %s829, %s819
        $region40: #{_lambda_.5} parent=35 // pred_fallthru
          _
      $region36: #{_lambda_.5} parent=5 // pred_fallthru
        _
      %p835 = scmp.le.s32.totalorder 2, %s13
      // Predicated region
      $region41: #{_lambda_.5} parent=5 // pred_check
        %p836 = pneg %p835
      $region42: #{_lambda_.5} parent=5 // pred_check_branch
        %838 = sbr.rel (%p836) target = $region44
      $region43: #{_lambda_.5} parent=5 // pred_region
        %s839 = ssub.s32 %s13, 2
        // Predicated region
        $region45: #{_lambda_.5} parent=43 // pred_check
          %p840 = pneg %p131
        $region46: #{_lambda_.5} parent=43 // pred_check_branch
          %842 = sbr.rel (%p840) target = $region48
        $region47: #{_lambda_.5} parent=43 // pred_region
          %s843 = sand.u32 %s116, 1
          %s844 = scalar_lea.sflag [#allocation3], %s843
          %s845 = sand.u32 %s116, 1
          %s846 = scalar_lea.vmem [#allocation2], %s845
          %847 = dma.done %s844, 16
        $region48: #{_lambda_.5} parent=43 // pred_fallthru
          _
      $region44: #{_lambda_.5} parent=5 // pred_fallthru
        _
    $region6: #{_lambda_.5} parent=1 // loop_footer
      %s17 = sadd.s32 1, %s13
    $region7: #{_lambda_.5} parent=1 // loop_footer_branch
      %12 = sbr.rel target = $region3
    $region8: #{_lambda_.5} parent=1 // loop_exit
      _
    %848 = vsyncpa [#allocation3], 1
    %s849 = scalar_lea.sflag [#allocation3], 1
    %850 = vsyncpa %s849, 1

</llo_original>
